<compile_context>
chip_gen: v7x
topology: tpu7x:2x2x1
jax: 0.10.0
libtpu: 0.0.40
codegen_flags: <defaults>
</compile_context>

<pallas_src>
import functools

import jax
import jax.numpy as jnp
from jax import lax
from jax.experimental import pallas as pl
from jax.experimental.pallas import tpu as pltpu


def _mlp_kernel(x_ref, w_in_ref, w_hid_ref, pack_ref, o_ref):
    """Fused msdSDF forward for one tile of TILE_N points.

    x_ref    : (TILE_N, D_in) f32   -- points (+ latent), natural layout
    w_in_ref : (H, D_in)      f32
    w_hid_ref: (L, H, H)      bf16  (compute dtype)
    pack_ref : (H, L+3)       f32   -- col 0: b_in, cols 1..L: b_hid[l],
                                       col L+1: w_out, [0, L+2]: b_out
    o_ref    : (1, TILE_N)    f32   -- lane-dense output row
    """
    n_hidden = w_hid_ref.shape[0]
    cd = w_hid_ref.dtype

    # Layer 0: Linear(D_in -> H) + ReLU, in f32 (K = D_in is tiny).
    # Contract the last dims of both operands (== w_in @ x^T), so the move to
    # the feature-major layout happens on the MXU, not in the wrapper.
    h = lax.dot_general(
        w_in_ref[...], x_ref[...],
        dimension_numbers=(((1,), (1,)), ((), ())),
        preferred_element_type=jnp.float32)                     # (H, TILE_N)
    h = jnp.maximum(h + pack_ref[:, 0:1], 0.0)

    def hidden_layer(h, w, b_col):
        # Linear(H, H) -> ReLU; Dropout(0.2) is identity in eval mode.
        hh = jnp.dot(w, h.astype(cd), preferred_element_type=jnp.float32)
        return jnp.maximum(hh + b_col, 0.0)

    if n_hidden <= 4:
        # Small L: static unroll (what fori_loop(unroll=True) would give),
        # with static bias-column slices.
        for i in range(n_hidden):
            h = hidden_layer(h, w_hid_ref[i], pack_ref[:, i + 1:i + 2])
    else:
        # Large L: rolled loop bounds live ranges (one (H, H) weight at a time).
        col_ids = lax.broadcasted_iota(jnp.int32, (1, pack_ref.shape[1]), 1)

        def body(i, h):
            # Dynamic bias-column extraction without a dynamic lane slice:
            # masked lane-reduction over the tiny packed bias block (VPU+XLU).
            b_col = jnp.sum(jnp.where(col_ids == i + 1, pack_ref[...], 0.0),
                            axis=1, keepdims=True)              # (H, 1)
            return hidden_layer(h, w_hid_ref[i], b_col)

        h = lax.fori_loop(0, n_hidden, body, h)

    # Output head Linear(H -> 1): VPU multiply + XLU sublane reduction gives a
    # lane-dense (1, TILE_N) row directly and keeps the MXU free.
    w_out_col = pack_ref[:, n_hidden + 1:n_hidden + 2]           # (H, 1)
    b_out = pack_ref[0:1, n_hidden + 2:n_hidden + 3]             # (1, 1)
    o_ref[...] = jnp.sum(h * w_out_col, axis=0, keepdims=True) + b_out


def _pick_vmem_limit_bytes():
    """Generation-aware scoped-VMEM budget: ~half of physical, capped."""
    try:
        cap = int(getattr(pltpu.get_tpu_info(), "vmem_capacity_bytes",
                          64 * 1024 * 1024))
    except Exception:
        cap = 64 * 1024 * 1024          # conservative fallback (v7x per-TC)
    return int(min(max(cap // 2, 16 * 1024 * 1024), 96 * 1024 * 1024))


@functools.partial(
    jax.jit,
    static_argnames=("tile_n", "compute_dtype", "single_buffer_weights",
                     "vmem_limit_bytes"))
def _msd_sdf_forward_impl(x, params, *, tile_n, compute_dtype,
                          single_buffer_weights, vmem_limit_bytes):
    w_in, b_in, w_hid, b_hid, w_out, b_out = params
    n, d_in = x.shape
    h_dim = w_in.shape[0]
    l = w_hid.shape[0]
    if tile_n % 128 != 0:
        raise ValueError("tile_n must be a multiple of 128 (lane width)")

    n_pad = ((n + tile_n - 1) // tile_n) * tile_n
    x_p = jnp.pad(x, ((0, n_pad - n), (0, 0))) if n_pad != n else x

    w_hid_c = w_hid.astype(compute_dtype)

    # Pack every 1-lane operand into one lane-packed (H, L+3) f32 block:
    #   col 0 -> b_in, cols 1..L -> b_hid, col L+1 -> w_out, [0, L+2] -> b_out.
    pack = jnp.zeros((h_dim, l + 3), jnp.float32)
    pack = pack.at[:, 0].set(b_in)
    pack = pack.at[:, 1:1 + l].set(b_hid.T)
    pack = pack.at[:, 1 + l].set(w_out)
    pack = pack.at[0, 2 + l].set(b_out)

    grid = (n_pad // tile_n,)

    # Loop-invariant operands are fetched once; single-buffer them to halve
    # their VMEM residency (matters at H=512, L=8 and on v7x's 64 MiB per-TC).
    inv_mode = pl.Buffered(1) if single_buffer_weights else None

    def inv_spec(shape):
        return pl.BlockSpec(shape, lambda i: (0,) * len(shape),
                            pipeline_mode=inv_mode)

    hid_itemsize = jnp.dtype(compute_dtype).itemsize
    cost = pl.CostEstimate(
        flops=2 * n_pad * (d_in * h_dim + l * h_dim * h_dim + h_dim),
        transcendentals=0,
        bytes_accessed=int(n_pad * d_in * 4 + n_pad * 4
                           + w_in.size * 4 + w_hid.size * hid_itemsize
                           + pack.size * 4),
    )

    out = pl.pallas_call(
        _mlp_kernel,
        out_shape=jax.ShapeDtypeStruct((1, n_pad), jnp.float32),
        grid_spec=pltpu.PrefetchScalarGridSpec(
            num_scalar_prefetch=0,
            grid=grid,
            in_specs=[
                pl.BlockSpec((tile_n, d_in), lambda i: (i, 0)),   # x tile
                inv_spec((h_dim, d_in)),                          # w_in (f32)
                inv_spec((l, h_dim, h_dim)),                      # w_hid (bf16)
                inv_spec((h_dim, l + 3)),                         # bias/w_out pack
            ],
            out_specs=pl.BlockSpec((1, tile_n), lambda i: (0, i)),  # lane-dense
        ),
        compiler_params=pltpu.CompilerParams(
            dimension_semantics=("parallel",),
            vmem_limit_bytes=vmem_limit_bytes,
        ),
        cost_estimate=cost,
    )(x_p, w_in, w_hid_c, pack)

    # torch.squeeze of the (N, 1) model output -> (N,); padded rows dropped.
    return out[0, :n]


def msd_sdf_forward(x, params, *, tile_n=512, compute_dtype=jnp.bfloat16):
    """msdSDF forward.  x: (N, 3+latent) f32 -> SDF values of shape (N,).

    N is zero-padded internally to a multiple of `tile_n` (a multiple of 128);
    padded rows are discarded.  The batch dim is kept even when N == 1 (unlike
    a bare torch.squeeze).  Dropout is identity (eval mode).
    """
    if x.shape[0] == 0:
        return jnp.zeros((0,), jnp.float32)
    vmem_limit = _pick_vmem_limit_bytes()
    try:
        return _msd_sdf_forward_impl(
            x, params, tile_n=tile_n, compute_dtype=compute_dtype,
            single_buffer_weights=True, vmem_limit_bytes=vmem_limit)
    except Exception:
        # Compatibility fallback: if this jax build rejects pl.Buffered(1)
        # (single buffering), rerun with default double-buffered operands.
        return _msd_sdf_forward_impl(
            x, params, tile_n=tile_n, compute_dtype=compute_dtype,
            single_buffer_weights=False, vmem_limit_bytes=vmem_limit)


def init_params(key, latent_size, layer_size, layer_number):
    """PyTorch nn.Linear-style init, U(-1/sqrt(fan_in), +1/sqrt(fan_in)).

    Returns (w_in (H, D_in), b_in (H,), w_hid (L, H, H), b_hid (L, H),
             w_out (H,), b_out ()).  Requires layer_number >= 1.
    """
    d_in = 3 + latent_size

    def linear(k, fan_in, fan_out):
        k1, k2 = jax.random.split(k)
        bound = fan_in ** -0.5
        w = jax.random.uniform(k1, (fan_out, fan_in), jnp.float32, -bound, bound)
        b = jax.random.uniform(k2, (fan_out,), jnp.float32, -bound, bound)
        return w, b

    keys = jax.random.split(key, 2 + layer_number)
    w_in, b_in = linear(keys[0], d_in, layer_size)
    hid = [linear(keys[1 + i], layer_size, layer_size)
           for i in range(layer_number)]
    w_hid = jnp.stack([w for w, _ in hid], axis=0)       # (L, H, H)
    b_hid = jnp.stack([b for _, b in hid], axis=0)       # (L, H)
    w_out2, b_out2 = linear(keys[-1], layer_size, 1)     # (1, H), (1,)
    return w_in, b_in, w_hid, b_hid, w_out2[0], b_out2[0]


def reference_forward(x, params, hidden_dtype=jnp.float32):
    """Pure-JAX reference mirroring the kernel's dtype recipe: layer 0 in f32,
    hidden matmuls with `hidden_dtype` operands + f32 accumulation, f32 head."""
    w_in, b_in, w_hid, b_hid, w_out, b_out = params
    h = jnp.dot(x, w_in.T, preferred_element_type=jnp.float32) + b_in[None, :]
    h = jnp.maximum(h, 0.0)
    for i in range(w_hid.shape[0]):
        h = jnp.dot(h.astype(hidden_dtype), w_hid[i].astype(hidden_dtype).T,
                    preferred_element_type=jnp.float32) + b_hid[i][None, :]
        h = jnp.maximum(h, 0.0)
    return h @ w_out + b_out


if __name__ == "__main__":
    def check(latent_size, layer_size, layer_number, n_points, tile_n):
        key = jax.random.PRNGKey(0)
        k_params, k_x = jax.random.split(key)
        params = init_params(k_params, latent_size, layer_size, layer_number)
        # Input mirrors torch.column_stack((latent.expand(N, latent), coord)).
        x = jax.random.normal(k_x, (n_points, 3 + latent_size), jnp.float32)

        out = jax.block_until_ready(msd_sdf_forward(x, params, tile_n=tile_n))
        assert out.shape == (n_points,)

        # Matched-recipe reference (bf16 hidden operands, f32 accumulate) ...
        ref_h = reference_forward(x, params, hidden_dtype=jnp.bfloat16)
        assert jnp.allclose(out, ref_h, atol=1e-2, rtol=1e-2), (
            float(jnp.max(jnp.abs(out - ref_h))))
        # ... and full-f32 reference (bf16 rounding of hidden layers only).
        ref_f = reference_forward(x, params, hidden_dtype=jnp.float32)
        assert jnp.allclose(out, ref_f, atol=1e-1, rtol=0.0), (
            float(jnp.max(jnp.abs(out - ref_f))))

    # Config 1: L=2 -> static-unroll hidden path; N=1000 is not a tile multiple
    # (padded to 1024 -> 2 grid steps, so "parallel" has work for 2 TCs).
    check(latent_size=13, layer_size=32, layer_number=2,
          n_points=1000, tile_n=512)
    # Config 2: L=5 -> lax.fori_loop hidden path (what realistic L=8 uses).
    check(latent_size=13, layer_size=32, layer_number=5,
          n_points=300, tile_n=256)

    print("KERNEL_OK")
</pallas_src>

<mosaic_0001>
module attributes {stable_mosaic.version = 11 : i64} {
  func.func @_mlp_kernel(%arg0: i32, %arg1: memref<512x16xf32, #tpu.memory_space<vmem>>, %arg2: memref<32x16xf32, #tpu.memory_space<vmem>>, %arg3: memref<2x32x32xbf16, #tpu.memory_space<vmem>>, %arg4: memref<32x5xf32, #tpu.memory_space<vmem>>, %arg5: memref<1x512xf32, #tpu.memory_space<vmem>>) attributes {dimension_semantics = [#tpu.dimension_semantics<parallel>], iteration_bounds = array<i64: 2>, scalar_prefetch = 0 : i64, scratch_operands = 0 : i64, tpu.core_type = #tpu.core_type<tc>, window_params = [{transform_indices = @transform_0, window_bounds = array<i64: 512, 16>}, {pipeline_mode = #tpu.pipeline_mode<synchronous>, transform_indices = @transform_1, window_bounds = array<i64: 32, 16>}, {pipeline_mode = #tpu.pipeline_mode<synchronous>, transform_indices = @transform_2, window_bounds = array<i64: 2, 32, 32>}, {pipeline_mode = #tpu.pipeline_mode<synchronous>, transform_indices = @transform_3, window_bounds = array<i64: 32, 5>}, {transform_indices = @transform_4, window_bounds = array<i64: 1, 512>}]} {
    %c0 = arith.constant 0 : index
    %c0_0 = arith.constant 0 : index
    %0 = vector.load %arg2[%c0, %c0_0] : memref<32x16xf32, #tpu.memory_space<vmem>>, vector<32x16xf32>
    %c0_1 = arith.constant 0 : index
    %c0_2 = arith.constant 0 : index
    %1 = vector.load %arg1[%c0_1, %c0_2] : memref<512x16xf32, #tpu.memory_space<vmem>>, vector<512x16xf32>
    %cst = arith.constant dense<0.000000e+00> : vector<32x512xf32>
    %2 = tpu.matmul %0, %1, %cst {dimension_numbers = #tpu.dot_dimension_numbers<[1], [1], [0], [0], [0, 0, 1, 0], [], []>} : vector<32x16xf32>, vector<512x16xf32>, vector<32x512xf32> -> vector<32x512xf32>
    %c0_3 = arith.constant 0 : index
    %c0_4 = arith.constant 0 : index
    %3 = vector.load %arg4[%c0_3, %c0_4] : memref<32x5xf32, #tpu.memory_space<vmem>>, vector<32x1xf32>
    %4 = vector.broadcast %3 : vector<32x1xf32> to vector<32x512xf32>
    %5 = arith.addf %2, %4 : vector<32x512xf32>
    %cst_5 = arith.constant 0.000000e+00 : f32
    %6 = vector.broadcast %cst_5 : f32 to vector<32x512xf32>
    %7 = arith.maximumf %5, %6 : vector<32x512xf32>
    %c0_6 = arith.constant 0 : index
    %c0_7 = arith.constant 0 : index
    %c0_8 = arith.constant 0 : index
    %8 = vector.load %arg3[%c0_6, %c0_7, %c0_8] : memref<2x32x32xbf16, #tpu.memory_space<vmem>>, vector<1x32x32xbf16>
    %9 = vector.shape_cast %8 : vector<1x32x32xbf16> to vector<32x32xbf16>
    %c0_9 = arith.constant 0 : index
    %c1 = arith.constant 1 : index
    %10 = vector.load %arg4[%c0_9, %c1] : memref<32x5xf32, #tpu.memory_space<vmem>>, vector<32x1xf32>
    %11 = arith.truncf %7 : vector<32x512xf32> to vector<32x512xbf16>
    %cst_10 = arith.constant dense<0.000000e+00> : vector<32x512xf32>
    %12 = tpu.matmul %9, %11, %cst_10 {dimension_numbers = #tpu.dot_dimension_numbers<[1], [0], [0], [1], [0, 0, 1, 1], [], []>} : vector<32x32xbf16>, vector<32x512xbf16>, vector<32x512xf32> -> vector<32x512xf32>
    %13 = vector.broadcast %10 : vector<32x1xf32> to vector<32x512xf32>
    %14 = arith.addf %12, %13 : vector<32x512xf32>
    %cst_11 = arith.constant 0.000000e+00 : f32
    %15 = vector.broadcast %cst_11 : f32 to vector<32x512xf32>
    %16 = arith.maximumf %14, %15 : vector<32x512xf32>
    %c1_12 = arith.constant 1 : index
    %c0_13 = arith.constant 0 : index
    %c0_14 = arith.constant 0 : index
    %17 = vector.load %arg3[%c1_12, %c0_13, %c0_14] : memref<2x32x32xbf16, #tpu.memory_space<vmem>>, vector<1x32x32xbf16>
    %18 = vector.shape_cast %17 : vector<1x32x32xbf16> to vector<32x32xbf16>
    %c0_15 = arith.constant 0 : index
    %c2 = arith.constant 2 : index
    %19 = vector.load %arg4[%c0_15, %c2] : memref<32x5xf32, #tpu.memory_space<vmem>>, vector<32x1xf32>
    %20 = arith.truncf %16 : vector<32x512xf32> to vector<32x512xbf16>
    %cst_16 = arith.constant dense<0.000000e+00> : vector<32x512xf32>
    %21 = tpu.matmul %18, %20, %cst_16 {dimension_numbers = #tpu.dot_dimension_numbers<[1], [0], [0], [1], [0, 0, 1, 1], [], []>} : vector<32x32xbf16>, vector<32x512xbf16>, vector<32x512xf32> -> vector<32x512xf32>
    %22 = vector.broadcast %19 : vector<32x1xf32> to vector<32x512xf32>
    %23 = arith.addf %21, %22 : vector<32x512xf32>
    %cst_17 = arith.constant 0.000000e+00 : f32
    %24 = vector.broadcast %cst_17 : f32 to vector<32x512xf32>
    %25 = arith.maximumf %23, %24 : vector<32x512xf32>
    %c0_18 = arith.constant 0 : index
    %c3 = arith.constant 3 : index
    %26 = vector.load %arg4[%c0_18, %c3] : memref<32x5xf32, #tpu.memory_space<vmem>>, vector<32x1xf32>
    %c0_19 = arith.constant 0 : index
    %c4 = arith.constant 4 : index
    %27 = vector.load %arg4[%c0_19, %c4] : memref<32x5xf32, #tpu.memory_space<vmem>>, vector<1x1xf32>
    %28 = vector.broadcast %26 : vector<32x1xf32> to vector<32x512xf32>
    %29 = arith.mulf %25, %28 : vector<32x512xf32>
    %cst_20 = arith.constant dense<0.000000e+00> : vector<512xf32>
    %30 = vector.multi_reduction <add>, %29, %cst_20 [0] : vector<32x512xf32> to vector<512xf32>
    %31 = vector.shape_cast %30 : vector<512xf32> to vector<1x512xf32>
    %32 = vector.broadcast %27 : vector<1x1xf32> to vector<1x512xf32>
    %33 = arith.addf %31, %32 : vector<1x512xf32>
    %c0_21 = arith.constant 0 : index
    %c0_22 = arith.constant 0 : index
    %34 = vector.load %arg5[%c0_21, %c0_22] : memref<1x512xf32, #tpu.memory_space<vmem>>, vector<1x512xf32>
    tpu.vector_store %arg5[%c0_21, %c0_22], %33 {strides = array<i32>} : memref<1x512xf32, #tpu.memory_space<vmem>>, vector<1x512xf32>,
    return
  }
  func.func @transform_0(%arg0: i32) -> (i32, i32) {
    %c0_i32 = arith.constant 0 : i32
    %c0_i32_0 = arith.constant 0 : i32
    return %arg0, %c0_i32 : i32, i32
  }
  func.func @transform_1(%arg0: i32) -> (i32, i32) {
    %c0_i32 = arith.constant 0 : i32
    %c0_i32_0 = arith.constant 0 : i32
    %c0_i32_1 = arith.constant 0 : i32
    return %c0_i32, %c0_i32_0 : i32, i32
  }
  func.func @transform_2(%arg0: i32) -> (i32, i32, i32) {
    %c0_i32 = arith.constant 0 : i32
    %c0_i32_0 = arith.constant 0 : i32
    %c0_i32_1 = arith.constant 0 : i32
    %c0_i32_2 = arith.constant 0 : i32
    return %c0_i32, %c0_i32_0, %c0_i32_1 : i32, i32, i32
  }
  func.func @transform_3(%arg0: i32) -> (i32, i32) {
    %c0_i32 = arith.constant 0 : i32
    %c0_i32_0 = arith.constant 0 : i32
    %c0_i32_1 = arith.constant 0 : i32
    return %c0_i32, %c0_i32_0 : i32, i32
  }
  func.func @transform_4(%arg0: i32) -> (i32, i32) {
    %c0_i32 = arith.constant 0 : i32
    %c0_i32_0 = arith.constant 0 : i32
    return %c0_i32, %arg0 : i32, i32
  }
}

module attributes {stable_mosaic.version = 11 : i64} {
  func.func @_mlp_kernel(%arg0: i32, %arg1: memref<512x16xf32, #tpu.memory_space<vmem>>, %arg2: memref<32x16xf32, #tpu.memory_space<vmem>>, %arg3: memref<2x32x32xbf16, #tpu.memory_space<vmem>>, %arg4: memref<32x5xf32, #tpu.memory_space<vmem>>, %arg5: memref<1x512xf32, #tpu.memory_space<vmem>>) attributes {dimension_semantics = [#tpu.dimension_semantics<parallel>], iteration_bounds = array<i64: 2>, scalar_prefetch = 0 : i64, scratch_operands = 0 : i64, tpu.core_type = #tpu.core_type<tc>, window_params = [{transform_indices = @transform_0, window_bounds = array<i64: 512, 16>}, {pipeline_mode = #tpu.pipeline_mode<synchronous>, transform_indices = @transform_1, window_bounds = array<i64: 32, 16>}, {pipeline_mode = #tpu.pipeline_mode<synchronous>, transform_indices = @transform_2, window_bounds = array<i64: 2, 32, 32>}, {pipeline_mode = #tpu.pipeline_mode<synchronous>, transform_indices = @transform_3, window_bounds = array<i64: 32, 5>}, {transform_indices = @transform_4, window_bounds = array<i64: 1, 512>}]} {
    %c0 = arith.constant 0 : index
    %c0_0 = arith.constant 0 : index
    %0 = vector.load %arg2[%c0, %c0_0] : memref<32x16xf32, #tpu.memory_space<vmem>>, vector<32x16xf32>
    %c0_1 = arith.constant 0 : index
    %c0_2 = arith.constant 0 : index
    %1 = vector.load %arg1[%c0_1, %c0_2] : memref<512x16xf32, #tpu.memory_space<vmem>>, vector<512x16xf32>
    %cst = arith.constant dense<0.000000e+00> : vector<32x512xf32>
    %2 = tpu.matmul %0, %1, %cst {dimension_numbers = #tpu.dot_dimension_numbers<[1], [1], [0], [0], [0, 0, 1, 0], [], []>} : vector<32x16xf32>, vector<512x16xf32>, vector<32x512xf32> -> vector<32x512xf32>
    %c0_3 = arith.constant 0 : index
    %c0_4 = arith.constant 0 : index
    %3 = vector.load %arg4[%c0_3, %c0_4] : memref<32x5xf32, #tpu.memory_space<vmem>>, vector<32x1xf32>
    %4 = vector.broadcast %3 : vector<32x1xf32> to vector<32x512xf32>
    %5 = arith.addf %2, %4 : vector<32x512xf32>
    %cst_5 = arith.constant 0.000000e+00 : f32
    %6 = vector.broadcast %cst_5 : f32 to vector<32x512xf32>
    %7 = arith.maximumf %5, %6 : vector<32x512xf32>
    %c0_6 = arith.constant 0 : index
    %c0_7 = arith.constant 0 : index
    %c0_8 = arith.constant 0 : index
    %8 = vector.load %arg3[%c0_6, %c0_7, %c0_8] : memref<2x32x32xbf16, #tpu.memory_space<vmem>>, vector<1x32x32xbf16>
    %9 = vector.shape_cast %8 : vector<1x32x32xbf16> to vector<32x32xbf16>
    %c0_9 = arith.constant 0 : index
    %c1 = arith.constant 1 : index
    %10 = vector.load %arg4[%c0_9, %c1] : memref<32x5xf32, #tpu.memory_space<vmem>>, vector<32x1xf32>
    %11 = arith.truncf %7 : vector<32x512xf32> to vector<32x512xbf16>
    %cst_10 = arith.constant dense<0.000000e+00> : vector<32x512xf32>
    %12 = tpu.matmul %9, %11, %cst_10 {dimension_numbers = #tpu.dot_dimension_numbers<[1], [0], [0], [1], [0, 0, 1, 1], [], []>} : vector<32x32xbf16>, vector<32x512xbf16>, vector<32x512xf32> -> vector<32x512xf32>
    %13 = vector.broadcast %10 : vector<32x1xf32> to vector<32x512xf32>
    %14 = arith.addf %12, %13 : vector<32x512xf32>
    %cst_11 = arith.constant 0.000000e+00 : f32
    %15 = vector.broadcast %cst_11 : f32 to vector<32x512xf32>
    %16 = arith.maximumf %14, %15 : vector<32x512xf32>
    %c1_12 = arith.constant 1 : index
    %c0_13 = arith.constant 0 : index
    %c0_14 = arith.constant 0 : index
    %17 = vector.load %arg3[%c1_12, %c0_13, %c0_14] : memref<2x32x32xbf16, #tpu.memory_space<vmem>>, vector<1x32x32xbf16>
    %18 = vector.shape_cast %17 : vector<1x32x32xbf16> to vector<32x32xbf16>
    %c0_15 = arith.constant 0 : index
    %c2 = arith.constant 2 : index
    %19 = vector.load %arg4[%c0_15, %c2] : memref<32x5xf32, #tpu.memory_space<vmem>>, vector<32x1xf32>
    %20 = arith.truncf %16 : vector<32x512xf32> to vector<32x512xbf16>
    %cst_16 = arith.constant dense<0.000000e+00> : vector<32x512xf32>
    %21 = tpu.matmul %18, %20, %cst_16 {dimension_numbers = #tpu.dot_dimension_numbers<[1], [0], [0], [1], [0, 0, 1, 1], [], []>} : vector<32x32xbf16>, vector<32x512xbf16>, vector<32x512xf32> -> vector<32x512xf32>
    %22 = vector.broadcast %19 : vector<32x1xf32> to vector<32x512xf32>
    %23 = arith.addf %21, %22 : vector<32x512xf32>
    %cst_17 = arith.constant 0.000000e+00 : f32
    %24 = vector.broadcast %cst_17 : f32 to vector<32x512xf32>
    %25 = arith.maximumf %23, %24 : vector<32x512xf32>
    %c0_18 = arith.constant 0 : index
    %c3 = arith.constant 3 : index
    %26 = vector.load %arg4[%c0_18, %c3] : memref<32x5xf32, #tpu.memory_space<vmem>>, vector<32x1xf32>
    %c0_19 = arith.constant 0 : index
    %c4 = arith.constant 4 : index
    %27 = vector.load %arg4[%c0_19, %c4] : memref<32x5xf32, #tpu.memory_space<vmem>>, vector<1x1xf32>
    %28 = vector.broadcast %26 : vector<32x1xf32> to vector<32x512xf32>
    %29 = arith.mulf %25, %28 : vector<32x512xf32>
    %cst_20 = arith.constant dense<0.000000e+00> : vector<512xf32>
    %30 = vector.multi_reduction <add>, %29, %cst_20 [0] : vector<32x512xf32> to vector<512xf32>
    %31 = vector.shape_cast %30 : vector<512xf32> to vector<1x512xf32>
    %32 = vector.broadcast %27 : vector<1x1xf32> to vector<1x512xf32>
    %33 = arith.addf %31, %32 : vector<1x512xf32>
    %c0_21 = arith.constant 0 : index
    %c0_22 = arith.constant 0 : index
    %34 = vector.load %arg5[%c0_21, %c0_22] : memref<1x512xf32, #tpu.memory_space<vmem>>, vector<1x512xf32>
    tpu.vector_store %arg5[%c0_21, %c0_22], %33 {strides = array<i32>} : memref<1x512xf32, #tpu.memory_space<vmem>>, vector<1x512xf32>,
    return
  }
  func.func @transform_0(%arg0: i32) -> (i32, i32) {
    %c0_i32 = arith.constant 0 : i32
    %c0_i32_0 = arith.constant 0 : i32
    return %arg0, %c0_i32 : i32, i32
  }
  func.func @transform_1(%arg0: i32) -> (i32, i32) {
    %c0_i32 = arith.constant 0 : i32
    %c0_i32_0 = arith.constant 0 : i32
    %c0_i32_1 = arith.constant 0 : i32
    return %c0_i32, %c0_i32_0 : i32, i32
  }
  func.func @transform_2(%arg0: i32) -> (i32, i32, i32) {
    %c0_i32 = arith.constant 0 : i32
    %c0_i32_0 = arith.constant 0 : i32
    %c0_i32_1 = arith.constant 0 : i32
    %c0_i32_2 = arith.constant 0 : i32
    return %c0_i32, %c0_i32_0, %c0_i32_1 : i32, i32, i32
  }
  func.func @transform_3(%arg0: i32) -> (i32, i32) {
    %c0_i32 = arith.constant 0 : i32
    %c0_i32_0 = arith.constant 0 : i32
    %c0_i32_1 = arith.constant 0 : i32
    return %c0_i32, %c0_i32_0 : i32, i32
  }
  func.func @transform_4(%arg0: i32) -> (i32, i32) {
    %c0_i32 = arith.constant 0 : i32
    %c0_i32_0 = arith.constant 0 : i32
    return %c0_i32, %arg0 : i32, i32
  }
}

</mosaic_0001>

<llo_original>
// kernel: _msd_sdf_forward_impl.1
$region0: #{_msd_sdf_forward_impl.1}
  #allocation0 [shape = 'u32[]', space=smem, size = 0x4, offset = 0x4, fixed_abs, tag = 'smem constant byte address 0x4 - core index']
  #allocation1 [shape = 'u32[144,128]{1,0:T(1,128)}', space=vmem, size = 0x12000, scoped, tag = 'internal scratch']
  %s0 = inlined_call_operand.vmem [shape: f32[1024,16], index: 0, kind: input, shape index: {}]
  %s1 = inlined_call_operand.vmem [shape: f32[32,16], index: 1, kind: input, shape index: {}]
  %s2 = inlined_call_operand.vmem [shape: bf16[2,32,32], index: 2, kind: input, shape index: {}]
  %s3 = inlined_call_operand.vmem [shape: f32[32,5], index: 3, kind: input, shape index: {}]
  %s4 = inlined_call_operand.hbm [shape: f32[1,1024], index: 4, kind: output, shape index: {}]
  %s5 = sld [smem:[#allocation0]]
  $region49: #{_msd_sdf_forward_impl.1} parent=0
    _
  %s7 = ssub.s32 1, %s5
  %s8 = scalar_select 0, %s7, %s5
  $region1: #{_msd_sdf_forward_impl.1} parent=0
    #allocation2 [shape = 'u8[4096]{0}', space=vmem, size = 0x1000, scoped, tag = 'output window, operand 0']
    #allocation3 [shape = 's32[2]{0}', space=sflag, size = 0x8, scoped, tag = 'scoped memory for _msd_sdf_forward_impl.1']
    %9 = vsyncpa [#allocation3], 0
    %s10 = scalar_lea.sflag [#allocation3], 1
    %11 = vsyncpa %s10, 0
    loop: start=0, step=1, limit=4
    $region2: #{_msd_sdf_forward_impl.1} parent=1 // loop_pre_header
      _
    $region3: #{_msd_sdf_forward_impl.1} parent=1 // loop_header
      %s13 = sphi 0, %s17
      %p14 = scmp.ge.s32.totalorder %s13, 4
      %s23 = sphi 0, %s25
      %s26 = sphi 0, %s23
      %s27 = sphi 0, %s26
      %s43 = sphi 0, %s27
      %s47 = sphi 0, %s47
      %s49 = sphi 0, %s47
      %s50 = sphi 0, %s49
      %s64 = sphi 0, %s50
      %s68 = sphi 0, %s68
      %s70 = sphi 0, %s68
      %s71 = sphi 0, %s70
      %s85 = sphi 0, %s71
      %s89 = sphi 0, %s89
      %s91 = sphi 0, %s89
      %s92 = sphi 0, %s91
      %s106 = sphi 0, %s92
      %s112 = sphi 0, %s114
      %s115 = sphi 0, %s112
      %s116 = sphi 0, %s115
      %s132 = sphi 0, %s116
    $region4: #{_msd_sdf_forward_impl.1} parent=1 // loop_header_branch
      %16 = sbr.rel (%p14) target = $region8
    $region5: #{_msd_sdf_forward_impl.1} parent=1 // loop_body
      %s18 = ssub.s32 %s13, 1
      %s19 = ssub.s32 %s13, 2
      %s20 = sadd.s32 %s13, 1
      %s21 = ssub.s32 %s13, %s20
      %p22 = scmp.eq.s32.totalorder %s21, 0
      %s24 = sadd.s32 %s23, 1
      %s25 = scalar_select %p22, %s23, %s24
      %p28 = pneg %p22
      %p29 = scmp.eq.s32.totalorder %s13, 1
      %p30 = por %p28, %p29
      %p31 = scmp.ne.s32.totalorder %s23, %s26
      %p32 = scmp.eq.s32.totalorder %s13, 0
      %p33 = por %p31, %p32
      %p34 = scmp.ne.s32.totalorder %s23, %s26
      %p35 = scmp.eq.s32.totalorder %s18, 1
      %p36 = por %p34, %p35
      %p37 = scmp.ne.s32.totalorder %s26, %s27
      %p38 = scmp.eq.s32.totalorder %s18, 0
      %p39 = por %p37, %p38
      %p40 = scmp.ne.s32.totalorder %s26, %s27
      %p41 = scmp.eq.s32.totalorder %s19, 1
      %p42 = por %p40, %p41
      %p44 = scmp.ne.s32.totalorder %s27, %s43
      %p45 = scmp.eq.s32.totalorder %s19, 0
      %p46 = por %p44, %p45
      %s48 = sadd.s32 %s47, 1
      %p51 = scmp.eq.s32.totalorder %s13, 1
      %p52 = scmp.ne.s32.totalorder %s47, %s49
      %p53 = scmp.eq.s32.totalorder %s13, 0
      %p54 = por %p52, %p53
      %p55 = scmp.ne.s32.totalorder %s47, %s49
      %p56 = scmp.eq.s32.totalorder %s18, 1
      %p57 = por %p55, %p56
      %p58 = scmp.ne.s32.totalorder %s49, %s50
      %p59 = scmp.eq.s32.totalorder %s18, 0
      %p60 = por %p58, %p59
      %p61 = scmp.ne.s32.totalorder %s49, %s50
      %p62 = scmp.eq.s32.totalorder %s19, 1
      %p63 = por %p61, %p62
      %p65 = scmp.ne.s32.totalorder %s50, %s64
      %p66 = scmp.eq.s32.totalorder %s19, 0
      %p67 = por %p65, %p66
      %s69 = sadd.s32 %s68, 1
      %p72 = scmp.eq.s32.totalorder %s13, 1
      %p73 = scmp.ne.s32.totalorder %s68, %s70
      %p74 = scmp.eq.s32.totalorder %s13, 0
      %p75 = por %p73, %p74
      %p76 = scmp.ne.s32.totalorder %s68, %s70
      %p77 = scmp.eq.s32.totalorder %s18, 1
      %p78 = por %p76, %p77
      %p79 = scmp.ne.s32.totalorder %s70, %s71
      %p80 = scmp.eq.s32.totalorder %s18, 0
      %p81 = por %p79, %p80
      %p82 = scmp.ne.s32.totalorder %s70, %s71
      %p83 = scmp.eq.s32.totalorder %s19, 1
      %p84 = por %p82, %p83
      %p86 = scmp.ne.s32.totalorder %s71, %s85
      %p87 = scmp.eq.s32.totalorder %s19, 0
      %p88 = por %p86, %p87
      %s90 = sadd.s32 %s89, 1
      %p93 = scmp.eq.s32.totalorder %s13, 1
      %p94 = scmp.ne.s32.totalorder %s89, %s91
      %p95 = scmp.eq.s32.totalorder %s13, 0
      %p96 = por %p94, %p95
      %p97 = scmp.ne.s32.totalorder %s89, %s91
      %p98 = scmp.eq.s32.totalorder %s18, 1
      %p99 = por %p97, %p98
      %p100 = scmp.ne.s32.totalorder %s91, %s92
      %p101 = scmp.eq.s32.totalorder %s18, 0
      %p102 = por %p100, %p101
      %p103 = scmp.ne.s32.totalorder %s91, %s92
      %p104 = scmp.eq.s32.totalorder %s19, 1
      %p105 = por %p103, %p104
      %p107 = scmp.ne.s32.totalorder %s92, %s106
      %p108 = scmp.eq.s32.totalorder %s19, 0
      %p109 = por %p107, %p108
      %s110 = ssub.s32 %s13, %s20
      %p111 = scmp.eq.s32.totalorder %s110, 0
      %s113 = sadd.s32 %s112, 1
      %s114 = scalar_select %p111, %s112, %s113
      %p117 = pneg %p111
      %p118 = scmp.eq.s32.totalorder %s13, 1
      %p119 = por %p117, %p118
      %p120 = scmp.ne.s32.totalorder %s112, %s115
      %p121 = scmp.eq.s32.totalorder %s13, 0
      %p122 = por %p120, %p121
      %p123 = scmp.ne.s32.totalorder %s112, %s115
      %p124 = scmp.eq.s32.totalorder %s18, 1
      %p125 = por %p123, %p124
      %p126 = scmp.ne.s32.totalorder %s115, %s116
      %p127 = scmp.eq.s32.totalorder %s18, 0
      %p128 = por %p126, %p127
      %p129 = scmp.ne.s32.totalorder %s115, %s116
      %p130 = scmp.eq.s32.totalorder %s19, 1
      %p131 = por %p129, %p130
      %p133 = scmp.ne.s32.totalorder %s116, %s132
      %p134 = scmp.eq.s32.totalorder %s19, 0
      %p135 = por %p133, %p134
      %p136 = scmp.le.s32.totalorder 1, %s13
      %p137 = scmp.lt.s32.totalorder %s13, 3
      %p138 = pnand %p136, %p137
      %p139 = pneg %p138
      // Predicated region
      $region9: #{_msd_sdf_forward_impl.1} parent=5 // pred_check
        _
      $region10: #{_msd_sdf_forward_impl.1} parent=5 // pred_check_branch
        %141 = sbr.rel (%p138) target = $region12
      $region11: #{_msd_sdf_forward_impl.1} parent=5 // pred_region
        %s142 = ssub.s32 %s13, 1
        // Predicated region
        $region13: #{_msd_sdf_forward_impl.1} parent=11 // pred_check
          %p143 = pneg %p60
        $region14: #{_msd_sdf_forward_impl.1} parent=11 // pred_check_branch
          %145 = sbr.rel (%p143) target = $region16
        $region15: #{_msd_sdf_forward_impl.1} parent=11 // pred_region
          _
        $region16: #{_msd_sdf_forward_impl.1} parent=11 // pred_fallthru
          _
        // Predicated region
        $region17: #{_msd_sdf_forward_impl.1} parent=11 // pred_check
          %p146 = pneg %p81
        $region18: #{_msd_sdf_forward_impl.1} parent=11 // pred_check_branch
          %148 = sbr.rel (%p146) target = $region20
        $region19: #{_msd_sdf_forward_impl.1} parent=11 // pred_region
          _
        $region20: #{_msd_sdf_forward_impl.1} parent=11 // pred_fallthru
          _
        // Predicated region
        $region21: #{_msd_sdf_forward_impl.1} parent=11 // pred_check
          %p149 = pneg %p102
        $region22: #{_msd_sdf_forward_impl.1} parent=11 // pred_check_branch
          %151 = sbr.rel (%p149) target = $region24
        $region23: #{_msd_sdf_forward_impl.1} parent=11 // pred_region
          _
        $region24: #{_msd_sdf_forward_impl.1} parent=11 // pred_fallthru
          _
      $region12: #{_msd_sdf_forward_impl.1} parent=5 // pred_fallthru
        _
      %p152 = scmp.lt.s32.totalorder %s13, 2
      // Predicated region
      $region25: #{_msd_sdf_forward_impl.1} parent=5 // pred_check
        %p153 = pneg %p152
      $region26: #{_msd_sdf_forward_impl.1} parent=5 // pred_check_branch
        %155 = sbr.rel (%p153) target = $region28
      $region27: #{_msd_sdf_forward_impl.1} parent=5 // pred_region
        // Predicated region
        $region29: #{_msd_sdf_forward_impl.1} parent=27 // pred_check
          %p156 = pneg %p33
        $region30: #{_msd_sdf_forward_impl.1} parent=27 // pred_check_branch
          %158 = sbr.rel (%p156) target = $region32
        $region31: #{_msd_sdf_forward_impl.1} parent=27 // pred_region
          %s159 = smul.u32 64, %s13
          %p160 = scmp.lt.s32.totalorder %s159, 127
          %s161 = scalar_select %p160, %s159, 127
          %s162 = smul.addr %s161, 8
          %s163 = scalar_lea.vmem %s0, %s162
          %s164 = smul.u32 64, %s13
        $region32: #{_msd_sdf_forward_impl.1} parent=27 // pred_fallthru
          _
      $region28: #{_msd_sdf_forward_impl.1} parent=5 // pred_fallthru
        _
      %p165 = scmp.le.s32.totalorder 1, %s13
      %p166 = scmp.lt.s32.totalorder %s13, 3
      %p167 = pnand %p165, %p166
      %p168 = pneg %p167
      // Predicated region
      $region33: #{_msd_sdf_forward_impl.1} parent=5 // pred_check
        _
      $region34: #{_msd_sdf_forward_impl.1} parent=5 // pred_check_branch
        %170 = sbr.rel (%p167) target = $region36
      $region35: #{_msd_sdf_forward_impl.1} parent=5 // pred_region
        %s171 = ssub.s32 %s13, 1
        %s172 = smul.u32 64, %s18
        %p173 = scmp.lt.s32.totalorder %s172, 127
        %s174 = scalar_select %p173, %s172, 127
        %s175 = smul.addr %s174, 8
        %s176 = scalar_lea.vmem %s0, %s175
        %p177 = pneg %p39
        %p178 = pneg %p36
        %p179 = pneg %p60
        %p180 = pneg %p57
        %p181 = pneg %p81
        %p182 = pneg %p78
        %p183 = pneg %p102
        %p184 = pneg %p99
        %p185 = pneg %p128
        %p186 = pneg %p125
        %s187 = sand.u32 %s115, 1
        %s188 = scalar_lea.sflag [#allocation3], %s187
        %s189 = sand.u32 %s115, 1
        %s190 = smul.addr %s189, 4
        %s191 = scalar_lea.vmem [#allocation2], %s190
        %s192 = smul.u32 64, %s18
        %p193 = scmp.lt.s32.totalorder %s192, 127
        %s194 = scalar_select %p193, %s192, 127
        %s195 = smul.addr %s194, 8
        %s196 = scalar_lea.vmem %s0, %s195
        %s197 = smul.u32 64, %s18
        %s198 = smul.u32 4, %s18
        %v200 = vld [vmem:[%s1] sm:$0xff]
        %v201 = vld [vmem:[%s1 + $0x8] sm:$0xff]
        %v202 = vld [vmem:[%s1 + $0x10] sm:$0xff]
        %v203 = vld [vmem:[%s1 + $0x18] sm:$0xff]
        %v204 = vld [vmem:[%s196] sm:$0xff]
        %v205 = vld [vmem:[%s196 + $0x8] sm:$0xff]
        %v206 = vld [vmem:[%s196 + $0x10] sm:$0xff]
        %v207 = vld [vmem:[%s196 + $0x18] sm:$0xff]
        %v208 = vld [vmem:[%s196 + $0x20] sm:$0xff]
        %v209 = vld [vmem:[%s196 + $0x28] sm:$0xff]
        %v210 = vld [vmem:[%s196 + $0x30] sm:$0xff]
        %v211 = vld [vmem:[%s196 + $0x38] sm:$0xff]
        %v212 = vld [vmem:[%s196 + $0x40] sm:$0xff]
        %v213 = vld [vmem:[%s196 + $0x48] sm:$0xff]
        %v214 = vld [vmem:[%s196 + $0x50] sm:$0xff]
        %v215 = vld [vmem:[%s196 + $0x58] sm:$0xff]
        %v216 = vld [vmem:[%s196 + $0x60] sm:$0xff]
        %v217 = vld [vmem:[%s196 + $0x68] sm:$0xff]
        %v218 = vld [vmem:[%s196 + $0x70] sm:$0xff]
        %v219 = vld [vmem:[%s196 + $0x78] sm:$0xff]
        %v220 = vld [vmem:[%s196 + $0x80] sm:$0xff]
        %v221 = vld [vmem:[%s196 + $0x88] sm:$0xff]
        %v222 = vld [vmem:[%s196 + $0x90] sm:$0xff]
        %v223 = vld [vmem:[%s196 + $0x98] sm:$0xff]
        %v224 = vld [vmem:[%s196 + $0xa0] sm:$0xff]
        %v225 = vld [vmem:[%s196 + $0xa8] sm:$0xff]
        %v226 = vld [vmem:[%s196 + $0xb0] sm:$0xff]
        %v227 = vld [vmem:[%s196 + $0xb8] sm:$0xff]
        %v228 = vld [vmem:[%s196 + $0xc0] sm:$0xff]
        %v229 = vld [vmem:[%s196 + $0xc8] sm:$0xff]
        %v230 = vld [vmem:[%s196 + $0xd0] sm:$0xff]
        %v231 = vld [vmem:[%s196 + $0xd8] sm:$0xff]
        %v232 = vld [vmem:[%s196 + $0xe0] sm:$0xff]
        %v233 = vld [vmem:[%s196 + $0xe8] sm:$0xff]
        %v234 = vld [vmem:[%s196 + $0xf0] sm:$0xff]
        %v235 = vld [vmem:[%s196 + $0xf8] sm:$0xff]
        %v236 = vld [vmem:[%s196 + $0x100] sm:$0xff]
        %v237 = vld [vmem:[%s196 + $0x108] sm:$0xff]
        %v238 = vld [vmem:[%s196 + $0x110] sm:$0xff]
        %v239 = vld [vmem:[%s196 + $0x118] sm:$0xff]
        %v240 = vld [vmem:[%s196 + $0x120] sm:$0xff]
        %v241 = vld [vmem:[%s196 + $0x128] sm:$0xff]
        %v242 = vld [vmem:[%s196 + $0x130] sm:$0xff]
        %v243 = vld [vmem:[%s196 + $0x138] sm:$0xff]
        %v244 = vld [vmem:[%s196 + $0x140] sm:$0xff]
        %v245 = vld [vmem:[%s196 + $0x148] sm:$0xff]
        %v246 = vld [vmem:[%s196 + $0x150] sm:$0xff]
        %v247 = vld [vmem:[%s196 + $0x158] sm:$0xff]
        %v248 = vld [vmem:[%s196 + $0x160] sm:$0xff]
        %v249 = vld [vmem:[%s196 + $0x168] sm:$0xff]
        %v250 = vld [vmem:[%s196 + $0x170] sm:$0xff]
        %v251 = vld [vmem:[%s196 + $0x178] sm:$0xff]
        %v252 = vld [vmem:[%s196 + $0x180] sm:$0xff]
        %v253 = vld [vmem:[%s196 + $0x188] sm:$0xff]
        %v254 = vld [vmem:[%s196 + $0x190] sm:$0xff]
        %v255 = vld [vmem:[%s196 + $0x198] sm:$0xff]
        %v256 = vld [vmem:[%s196 + $0x1a0] sm:$0xff]
        %v257 = vld [vmem:[%s196 + $0x1a8] sm:$0xff]
        %v258 = vld [vmem:[%s196 + $0x1b0] sm:$0xff]
        %v259 = vld [vmem:[%s196 + $0x1b8] sm:$0xff]
        %v260 = vld [vmem:[%s196 + $0x1c0] sm:$0xff]
        %v261 = vld [vmem:[%s196 + $0x1c8] sm:$0xff]
        %v262 = vld [vmem:[%s196 + $0x1d0] sm:$0xff]
        %v263 = vld [vmem:[%s196 + $0x1d8] sm:$0xff]
        %v264 = vld [vmem:[%s196 + $0x1e0] sm:$0xff]
        %v265 = vld [vmem:[%s196 + $0x1e8] sm:$0xff]
        %v266 = vld [vmem:[%s196 + $0x1f0] sm:$0xff]
        %v267 = vld [vmem:[%s196 + $0x1f8] sm:$0xff]
        %v268 = vld [vmem:[%s3] sm:$0xff]
        %v269 = vld [vmem:[%s3 + $0x8] sm:$0xff]
        %v270 = vld [vmem:[%s3 + $0x10] sm:$0xff]
        %v271 = vld [vmem:[%s3 + $0x18] sm:$0xff]
        %273 = vset.pattern.permute.xlu0 0
        %274 = vperm.xlu0 %273, %v268
        %v275 = vpop.permute.xlu0 %274
        %278 = vset.pattern.permute.xlu0 0
        %279 = vperm.xlu0 %278, %v269
        %v280 = vpop.permute.xlu0 %279
        %283 = vset.pattern.permute.xlu0 0
        %284 = vperm.xlu0 %283, %v270
        %v285 = vpop.permute.xlu0 %284
        %288 = vset.pattern.permute.xlu0 0
        %289 = vperm.xlu0 %288, %v271
        %v290 = vpop.permute.xlu0 %289
        %vm292 = vcmask 130048
        %v294 = vsel %vm292, %v200, 0
        %v297 = vsel %vm292, %v201, 0
        %v300 = vsel %vm292, %v202, 0
        %v303 = vsel %vm292, %v203, 0
        %v306 = vsel %vm292, %v204, 0
        %v309 = vsel %vm292, %v205, 0
        %v312 = vsel %vm292, %v206, 0
        %v315 = vsel %vm292, %v207, 0
        %v318 = vsel %vm292, %v208, 0
        %v321 = vsel %vm292, %v209, 0
        %v324 = vsel %vm292, %v210, 0
        %v327 = vsel %vm292, %v211, 0
        %v330 = vsel %vm292, %v212, 0
        %v333 = vsel %vm292, %v213, 0
        %v336 = vsel %vm292, %v214, 0
        %v339 = vsel %vm292, %v215, 0
        %v342 = vsel %vm292, %v216, 0
        %v345 = vsel %vm292, %v217, 0
        %v348 = vsel %vm292, %v218, 0
        %v351 = vsel %vm292, %v219, 0
        %v354 = vsel %vm292, %v220, 0
        %v357 = vsel %vm292, %v221, 0
        %v360 = vsel %vm292, %v222, 0
        %v363 = vsel %vm292, %v223, 0
        %v366 = vsel %vm292, %v224, 0
        %v369 = vsel %vm292, %v225, 0
        %v372 = vsel %vm292, %v226, 0
        %v375 = vsel %vm292, %v227, 0
        %v378 = vsel %vm292, %v228, 0
        %v381 = vsel %vm292, %v229, 0
        %v384 = vsel %vm292, %v230, 0
        %v387 = vsel %vm292, %v231, 0
        %v390 = vsel %vm292, %v232, 0
        %v393 = vsel %vm292, %v233, 0
        %v396 = vsel %vm292, %v234, 0
        %v399 = vsel %vm292, %v235, 0
        %v402 = vsel %vm292, %v236, 0
        %v405 = vsel %vm292, %v237, 0
        %v408 = vsel %vm292, %v238, 0
        %v411 = vsel %vm292, %v239, 0
        %v414 = vsel %vm292, %v240, 0
        %v417 = vsel %vm292, %v241, 0
        %v420 = vsel %vm292, %v242, 0
        %v423 = vsel %vm292, %v243, 0
        %v426 = vsel %vm292, %v244, 0
        %v429 = vsel %vm292, %v245, 0
        %v432 = vsel %vm292, %v246, 0
        %v435 = vsel %vm292, %v247, 0
        %v438 = vsel %vm292, %v248, 0
        %v441 = vsel %vm292, %v249, 0
        %v444 = vsel %vm292, %v250, 0
        %v447 = vsel %vm292, %v251, 0
        %v450 = vsel %vm292, %v252, 0
        %v453 = vsel %vm292, %v253, 0
        %v456 = vsel %vm292, %v254, 0
        %v459 = vsel %vm292, %v255, 0
        %v462 = vsel %vm292, %v256, 0
        %v465 = vsel %vm292, %v257, 0
        %v468 = vsel %vm292, %v258, 0
        %v471 = vsel %vm292, %v259, 0
        %v474 = vsel %vm292, %v260, 0
        %v477 = vsel %vm292, %v261, 0
        %v480 = vsel %vm292, %v262, 0
        %v483 = vsel %vm292, %v263, 0
        %v486 = vsel %vm292, %v264, 0
        %v489 = vsel %vm292, %v265, 0
        %v492 = vsel %vm292, %v266, 0
        %v495 = vsel %vm292, %v267, 0
        %497 = vmatprep.subr.mxu0 0.0
        %498 = vmatpush1.xpose.msra.mxu0 %v306
        %499 = vmatprep.subr.mxu0 0.0
        %500 = vmatpush1.xpose.msra.mxu0 %v309
        %501 = vmatprep.subr.mxu0 0.0
        %502 = vmatpush1.xpose.msra.mxu0 %v312
        %503 = vmatprep.subr.mxu0 0.0
        %504 = vmatpush1.xpose.msra.mxu0 %v315
        %505 = vmatprep.subr.mxu0 0.0
        %506 = vmatpush1.xpose.msra.mxu0 %v318
        %507 = vmatprep.subr.mxu0 0.0
        %508 = vmatpush1.xpose.msra.mxu0 %v321
        %509 = vmatprep.subr.mxu0 0.0
        %510 = vmatpush1.xpose.msra.mxu0 %v324
        %511 = vmatprep.subr.mxu0 0.0
        %512 = vmatpush1.xpose.msra.mxu0 %v327
        %513 = vmatprep.subr.mxu0 0.0
        %514 = vmatpush1.xpose.msra.mxu0 %v330
        %515 = vmatprep.subr.mxu0 0.0
        %516 = vmatpush1.xpose.msra.mxu0 %v333
        %517 = vmatprep.subr.mxu0 0.0
        %518 = vmatpush1.xpose.msra.mxu0 %v336
        %519 = vmatprep.subr.mxu0 0.0
        %520 = vmatpush1.xpose.msra.mxu0 %v339
        %521 = vmatprep.subr.mxu0 0.0
        %522 = vmatpush1.xpose.msra.mxu0 %v342
        %523 = vmatprep.subr.mxu0 0.0
        %524 = vmatpush1.xpose.msra.mxu0 %v345
        %525 = vmatprep.subr.mxu0 0.0
        %526 = vmatpush1.xpose.msra.mxu0 %v348
        %527 = vmatprep.subr.mxu0 0.0
        %528 = vmatpush1.xpose.msra.mxu0 %v351
        %529 = vmatprep.subr.mxu0 0.0
        %530 = vmatpush1.xpose.msra.mxu0 %v354
        %531 = vmatprep.subr.mxu0 0.0
        %532 = vmatpush1.xpose.msra.mxu0 %v357
        %533 = vmatprep.subr.mxu0 0.0
        %534 = vmatpush1.xpose.msra.mxu0 %v360
        %535 = vmatprep.subr.mxu0 0.0
        %536 = vmatpush1.xpose.msra.mxu0 %v363
        %537 = vmatprep.subr.mxu0 0.0
        %538 = vmatpush1.xpose.msra.mxu0 %v366
        %539 = vmatprep.subr.mxu0 0.0
        %540 = vmatpush1.xpose.msra.mxu0 %v369
        %541 = vmatprep.subr.mxu0 0.0
        %542 = vmatpush1.xpose.msra.mxu0 %v372
        %543 = vmatprep.subr.mxu0 0.0
        %544 = vmatpush1.xpose.msra.mxu0 %v375
        %545 = vmatprep.subr.mxu0 0.0
        %546 = vmatpush1.xpose.msra.mxu0 %v378
        %547 = vmatprep.subr.mxu0 0.0
        %548 = vmatpush1.xpose.msra.mxu0 %v381
        %549 = vmatprep.subr.mxu0 0.0
        %550 = vmatpush1.xpose.msra.mxu0 %v384
        %551 = vmatprep.subr.mxu0 0.0
        %552 = vmatpush1.xpose.msra.mxu0 %v387
        %553 = vmatprep.subr.mxu0 0.0
        %554 = vmatpush1.xpose.msra.mxu0 %v390
        %555 = vmatprep.subr.mxu0 0.0
        %556 = vmatpush1.xpose.msra.mxu0 %v393
        %557 = vmatprep.subr.mxu0 0.0
        %558 = vmatpush1.xpose.msra.mxu0 %v396
        %559 = vmatprep.subr.mxu0 0.0
        %560 = vmatpush1.xpose.msra.mxu0 %v399
        %561 = vmatprep.mubr.f32.mxu0 0.0
        %562 = vmatmul.mubr.f32.gmra.mrb[0].mxu0 %v294
        %v563 = vpop.f32.mrb[0].mxu0
        %v564 = vadd.f32 %v275, %v563
        %v565 = vpop.f32.mrb[0].mxu0
        %v566 = vadd.f32 %v275, %v565
        %567 = vmatprep.mubr.f32.mxu0 0.0
        %568 = vmatmul.mubr.f32.gmra.mrb[0].mxu0 %v297
        %v569 = vpop.f32.mrb[0].mxu0
        %v570 = vadd.f32 %v280, %v569
        %v571 = vpop.f32.mrb[0].mxu0
        %v572 = vadd.f32 %v280, %v571
        %573 = vmatprep.mubr.f32.mxu0 0.0
        %574 = vmatmul.mubr.f32.gmra.mrb[0].mxu0 %v300
        %v575 = vpop.f32.mrb[0].mxu0
        %v576 = vadd.f32 %v285, %v575
        %v577 = vpop.f32.mrb[0].mxu0
        %v578 = vadd.f32 %v285, %v577
        %579 = vmatprep.mubr.f32.mxu0 0.0
        %580 = vmatmul.mubr.f32.gmra.mrb[0].mxu0 %v303
        %v581 = vpop.f32.mrb[0].mxu0
        %v582 = vadd.f32 %v290, %v581
        %v583 = vpop.f32.mrb[0].mxu0
        %v584 = vadd.f32 %v290, %v583
        %585 = vdwg.mxu0
        %586 = vmatprep.subr.mxu0 0.0
        %587 = vmatpush1.xpose.msra.mxu0 %v402
        %588 = vmatprep.subr.mxu0 0.0
        %589 = vmatpush1.xpose.msra.mxu0 %v405
        %590 = vmatprep.subr.mxu0 0.0
        %591 = vmatpush1.xpose.msra.mxu0 %v408
        %592 = vmatprep.subr.mxu0 0.0
        %593 = vmatpush1.xpose.msra.mxu0 %v411
        %594 = vmatprep.subr.mxu0 0.0
        %595 = vmatpush1.xpose.msra.mxu0 %v414
        %596 = vmatprep.subr.mxu0 0.0
        %597 = vmatpush1.xpose.msra.mxu0 %v417
        %598 = vmatprep.subr.mxu0 0.0
        %599 = vmatpush1.xpose.msra.mxu0 %v420
        %600 = vmatprep.subr.mxu0 0.0
        %601 = vmatpush1.xpose.msra.mxu0 %v423
        %602 = vmatprep.subr.mxu0 0.0
        %603 = vmatpush1.xpose.msra.mxu0 %v426
        %604 = vmatprep.subr.mxu0 0.0
        %605 = vmatpush1.xpose.msra.mxu0 %v429
        %606 = vmatprep.subr.mxu0 0.0
        %607 = vmatpush1.xpose.msra.mxu0 %v432
        %608 = vmatprep.subr.mxu0 0.0
        %609 = vmatpush1.xpose.msra.mxu0 %v435
        %610 = vmatprep.subr.mxu0 0.0
        %611 = vmatpush1.xpose.msra.mxu0 %v438
        %612 = vmatprep.subr.mxu0 0.0
        %613 = vmatpush1.xpose.msra.mxu0 %v441
        %614 = vmatprep.subr.mxu0 0.0
        %615 = vmatpush1.xpose.msra.mxu0 %v444
        %616 = vmatprep.subr.mxu0 0.0
        %617 = vmatpush1.xpose.msra.mxu0 %v447
        %618 = vmatprep.subr.mxu0 0.0
        %619 = vmatpush1.xpose.msra.mxu0 %v450
        %620 = vmatprep.subr.mxu0 0.0
        %621 = vmatpush1.xpose.msra.mxu0 %v453
        %622 = vmatprep.subr.mxu0 0.0
        %623 = vmatpush1.xpose.msra.mxu0 %v456
        %624 = vmatprep.subr.mxu0 0.0
        %625 = vmatpush1.xpose.msra.mxu0 %v459
        %626 = vmatprep.subr.mxu0 0.0
        %627 = vmatpush1.xpose.msra.mxu0 %v462
        %628 = vmatprep.subr.mxu0 0.0
        %629 = vmatpush1.xpose.msra.mxu0 %v465
        %630 = vmatprep.subr.mxu0 0.0
        %631 = vmatpush1.xpose.msra.mxu0 %v468
        %632 = vmatprep.subr.mxu0 0.0
        %633 = vmatpush1.xpose.msra.mxu0 %v471
        %634 = vmatprep.subr.mxu0 0.0
        %635 = vmatpush1.xpose.msra.mxu0 %v474
        %636 = vmatprep.subr.mxu0 0.0
        %637 = vmatpush1.xpose.msra.mxu0 %v477
        %638 = vmatprep.subr.mxu0 0.0
        %639 = vmatpush1.xpose.msra.mxu0 %v480
        %640 = vmatprep.subr.mxu0 0.0
        %641 = vmatpush1.xpose.msra.mxu0 %v483
        %642 = vmatprep.subr.mxu0 0.0
        %643 = vmatpush1.xpose.msra.mxu0 %v486
        %644 = vmatprep.subr.mxu0 0.0
        %645 = vmatpush1.xpose.msra.mxu0 %v489
        %646 = vmatprep.subr.mxu0 0.0
        %647 = vmatpush1.xpose.msra.mxu0 %v492
        %648 = vmatprep.subr.mxu0 0.0
        %649 = vmatpush1.xpose.msra.mxu0 %v495
        %650 = vmatprep.mubr.f32.mxu0 0.0
        %651 = vmatmul.mubr.f32.gmra.mrb[0].mxu0 %v294
        %v652 = vpop.f32.mrb[0].mxu0
        %v653 = vadd.f32 %v275, %v652
        %v654 = vpop.f32.mrb[0].mxu0
        %v655 = vadd.f32 %v275, %v654
        %656 = vmatprep.mubr.f32.mxu0 0.0
        %657 = vmatmul.mubr.f32.gmra.mrb[0].mxu0 %v297
        %v658 = vpop.f32.mrb[0].mxu0
        %v659 = vadd.f32 %v280, %v658
        %v660 = vpop.f32.mrb[0].mxu0
        %v661 = vadd.f32 %v280, %v660
        %662 = vmatprep.mubr.f32.mxu0 0.0
        %663 = vmatmul.mubr.f32.gmra.mrb[0].mxu0 %v300
        %v664 = vpop.f32.mrb[0].mxu0
        %v665 = vadd.f32 %v285, %v664
        %v666 = vpop.f32.mrb[0].mxu0
        %v667 = vadd.f32 %v285, %v666
        %668 = vmatprep.mubr.f32.mxu0 0.0
        %669 = vmatmul.mubr.f32.gmra.mrb[0].mxu0 %v303
        %v670 = vpop.f32.mrb[0].mxu0
        %v671 = vadd.f32 %v290, %v670
        %v672 = vpop.f32.mrb[0].mxu0
        %v673 = vadd.f32 %v290, %v672
        %674 = vdwg.mxu0
        %v675 = vmax.f32 %v564, 0.0
        %v676 = vmax.f32 %v566, 0.0
        %v677 = vmax.f32 %v653, 0.0
        %v678 = vmax.f32 %v655, 0.0
        %v679 = vmax.f32 %v570, 0.0
        %v680 = vmax.f32 %v572, 0.0
        %v681 = vmax.f32 %v659, 0.0
        %v682 = vmax.f32 %v661, 0.0
        %v683 = vmax.f32 %v576, 0.0
        %v684 = vmax.f32 %v578, 0.0
        %v685 = vmax.f32 %v665, 0.0
        %v686 = vmax.f32 %v667, 0.0
        %v687 = vmax.f32 %v582, 0.0
        %v688 = vmax.f32 %v584, 0.0
        %v689 = vmax.f32 %v671, 0.0
        %v690 = vmax.f32 %v673, 0.0
        %v691 = vld [vmem:[%s2] sm:$0xf]
        %v692 = vld [vmem:[%s2 + $0x4] sm:$0xf]
        %v693 = vld [vmem:[%s2 + $0x8] sm:$0xf]
        %v694 = vld [vmem:[%s2 + $0xc] sm:$0xf]
        %v695 = vpack.c.bf16 %v679, %v675
        %v696 = vpack.c.bf16 %v680, %v676
        %v697 = vpack.c.bf16 %v681, %v677
        %v698 = vpack.c.bf16 %v682, %v678
        %v699 = vpack.c.bf16 %v687, %v683
        %v700 = vpack.c.bf16 %v688, %v684
        %v701 = vpack.c.bf16 %v689, %v685
        %v702 = vpack.c.bf16 %v690, %v686
        %703 = vset.pattern.permute.xlu0 1
        %704 = vperm.xlu0 %703, %v268
        %v705 = vpop.permute.xlu0 %704
        %707 = vset.pattern.permute.xlu0 1
        %708 = vperm.xlu0 %707, %v269
        %v709 = vpop.permute.xlu0 %708
        %711 = vset.pattern.permute.xlu0 1
        %712 = vperm.xlu0 %711, %v270
        %v713 = vpop.permute.xlu0 %712
        %715 = vset.pattern.permute.xlu0 1
        %716 = vperm.xlu0 %715, %v271
        %v717 = vpop.permute.xlu0 %716
        %v723 = vunpack.c.l.b16 %v691
        %v724 = vunpack.c.l.b16 %v692
        %v725 = vunpack.c.l.b16 %v693
        %v726 = vunpack.c.l.b16 %v694
        %v727 = vpack.c.b16 %v724, %v723
        %v728 = vpack.c.b16 %v726, %v725
        %vm729 = vcmask 261120
        %v731 = vsel %vm729, %v727, 0
        %v734 = vsel %vm729, %v728, 0
        %736 = vmatprep.subr.bf16.mxu0 %v696
        %737 = vmatpush1.bf16.msra.mxu0 %v695
        %738 = vmatprep.subr.bf16.mxu0 %v700
        %739 = vmatpush1.bf16.msra.mxu0 %v699
        %740 = vmatprep.subr.bf16.mxu0 0
        %741 = vmatpush1.bf16.msra.mxu0 0
        %742 = vmatprep.subr.bf16.mxu0 0
        %743 = vmatpush1.bf16.msra.mxu0 0
        %744 = vmatprep.subr.bf16.mxu0 0
        %745 = vmatpush1.bf16.msra.mxu0 0
        %746 = vmatprep.subr.bf16.mxu0 0
        %747 = vmatpush1.bf16.msra.mxu0 0
        %748 = vmatprep.subr.bf16.mxu0 0
        %749 = vmatpush1.bf16.msra.mxu0 0
        %750 = vmatprep.subr.bf16.mxu0 0
        %751 = vmatpush1.bf16.msra.mxu0 0
        %752 = vmatprep.subr.bf16.mxu0 0
        %753 = vmatpush1.bf16.msra.mxu0 0
        %754 = vmatprep.subr.bf16.mxu0 0
        %755 = vmatpush1.bf16.msra.mxu0 0
        %756 = vmatprep.subr.bf16.mxu0 0
        %757 = vmatpush1.bf16.msra.mxu0 0
        %758 = vmatprep.subr.bf16.mxu0 0
        %759 = vmatpush1.bf16.msra.mxu0 0
        %760 = vmatprep.subr.bf16.mxu0 0
        %761 = vmatpush1.bf16.msra.mxu0 0
        %762 = vmatprep.subr.bf16.mxu0 0
        %763 = vmatpush1.bf16.msra.mxu0 0
        %764 = vmatprep.subr.bf16.mxu0 0
        %765 = vmatpush1.bf16.msra.mxu0 0
        %766 = vmatprep.subr.bf16.mxu0 0
        %767 = vmatpush1.bf16.msra.mxu0 0
        %768 = vmatprep.mubr.bf16.mxu0 0
        %769 = vmatmul.mubr.bf16.gmra.mrb[0].mxu0 %v731
        %v770 = vpop.f32.mrb[0].mxu0
        %v771 = vadd.f32 %v705, %v770
        %v772 = vpop.f32.mrb[0].mxu0
        %v773 = vadd.f32 %v705, %v772
        %v774 = vpop.f32.mrb[0].mxu0
        %v775 = vadd.f32 %v709, %v774
        %v776 = vpop.f32.mrb[0].mxu0
        %v777 = vadd.f32 %v709, %v776
        %778 = vmatprep.mubr.bf16.mxu0 0
        %779 = vmatmul.mubr.bf16.gmra.mrb[0].mxu0 %v734
        %v780 = vpop.f32.mrb[0].mxu0
        %v781 = vadd.f32 %v713, %v780
        %v782 = vpop.f32.mrb[0].mxu0
        %v783 = vadd.f32 %v713, %v782
        %v784 = vpop.f32.mrb[0].mxu0
        %v785 = vadd.f32 %v717, %v784
        %v786 = vpop.f32.mrb[0].mxu0
        %v787 = vadd.f32 %v717, %v786
        %788 = vdwg.mxu0
        %789 = vmatprep.subr.bf16.mxu0 %v698
        %790 = vmatpush1.bf16.msra.mxu0 %v697
        %791 = vmatprep.subr.bf16.mxu0 %v702
        %792 = vmatpush1.bf16.msra.mxu0 %v701
        %793 = vmatprep.subr.bf16.mxu0 0
        %794 = vmatpush1.bf16.msra.mxu0 0
        %795 = vmatprep.subr.bf16.mxu0 0
        %796 = vmatpush1.bf16.msra.mxu0 0
        %797 = vmatprep.subr.bf16.mxu0 0
        %798 = vmatpush1.bf16.msra.mxu0 0
        %799 = vmatprep.subr.bf16.mxu0 0
        %800 = vmatpush1.bf16.msra.mxu0 0
        %801 = vmatprep.subr.bf16.mxu0 0
        %802 = vmatpush1.bf16.msra.mxu0 0
        %803 = vmatprep.subr.bf16.mxu0 0
        %804 = vmatpush1.bf16.msra.mxu0 0
        %805 = vmatprep.subr.bf16.mxu0 0
        %806 = vmatpush1.bf16.msra.mxu0 0
        %807 = vmatprep.subr.bf16.mxu0 0
        %808 = vmatpush1.bf16.msra.mxu0 0
        %809 = vmatprep.subr.bf16.mxu0 0
        %810 = vmatpush1.bf16.msra.mxu0 0
        %811 = vmatprep.subr.bf16.mxu0 0
        %812 = vmatpush1.bf16.msra.mxu0 0
        %813 = vmatprep.subr.bf16.mxu0 0
        %814 = vmatpush1.bf16.msra.mxu0 0
        %815 = vmatprep.subr.bf16.mxu0 0
        %816 = vmatpush1.bf16.msra.mxu0 0
        %817 = vmatprep.subr.bf16.mxu0 0
        %818 = vmatpush1.bf16.msra.mxu0 0
        %819 = vmatprep.subr.bf16.mxu0 0
        %820 = vmatpush1.bf16.msra.mxu0 0
        %821 = vmatprep.mubr.bf16.mxu0 0
        %822 = vmatmul.mubr.bf16.gmra.mrb[0].mxu0 %v731
        %v823 = vpop.f32.mrb[0].mxu0
        %v824 = vadd.f32 %v705, %v823
        %v825 = vpop.f32.mrb[0].mxu0
        %v826 = vadd.f32 %v705, %v825
        %v827 = vpop.f32.mrb[0].mxu0
        %v828 = vadd.f32 %v709, %v827
        %v829 = vpop.f32.mrb[0].mxu0
        %v830 = vadd.f32 %v709, %v829
        %831 = vmatprep.mubr.bf16.mxu0 0
        %832 = vmatmul.mubr.bf16.gmra.mrb[0].mxu0 %v734
        %v833 = vpop.f32.mrb[0].mxu0
        %v834 = vadd.f32 %v713, %v833
        %v835 = vpop.f32.mrb[0].mxu0
        %v836 = vadd.f32 %v713, %v835
        %v837 = vpop.f32.mrb[0].mxu0
        %v838 = vadd.f32 %v717, %v837
        %v839 = vpop.f32.mrb[0].mxu0
        %v840 = vadd.f32 %v717, %v839
        %841 = vdwg.mxu0
        %v842 = vmax.f32 %v771, 0.0
        %v843 = vmax.f32 %v773, 0.0
        %v844 = vmax.f32 %v824, 0.0
        %v845 = vmax.f32 %v826, 0.0
        %v846 = vmax.f32 %v775, 0.0
        %v847 = vmax.f32 %v777, 0.0
        %v848 = vmax.f32 %v828, 0.0
        %v849 = vmax.f32 %v830, 0.0
        %v850 = vmax.f32 %v781, 0.0
        %v851 = vmax.f32 %v783, 0.0
        %v852 = vmax.f32 %v834, 0.0
        %v853 = vmax.f32 %v836, 0.0
        %v854 = vmax.f32 %v785, 0.0
        %v855 = vmax.f32 %v787, 0.0
        %v856 = vmax.f32 %v838, 0.0
        %v857 = vmax.f32 %v840, 0.0
        %s858 = scalar_lea.vmem %s2, 16
        %v859 = vld [vmem:[%s858] sm:$0xf]
        %v860 = vld [vmem:[%s858 + $0x4] sm:$0xf]
        %v861 = vld [vmem:[%s858 + $0x8] sm:$0xf]
        %v862 = vld [vmem:[%s858 + $0xc] sm:$0xf]
        %v863 = vpack.c.bf16 %v846, %v842
        %v864 = vpack.c.bf16 %v847, %v843
        %v865 = vpack.c.bf16 %v848, %v844
        %v866 = vpack.c.bf16 %v849, %v845
        %v867 = vpack.c.bf16 %v854, %v850
        %v868 = vpack.c.bf16 %v855, %v851
        %v869 = vpack.c.bf16 %v856, %v852
        %v870 = vpack.c.bf16 %v857, %v853
        %871 = vset.pattern.permute.xlu0 2
        %872 = vperm.xlu0 %871, %v268
        %v873 = vpop.permute.xlu0 %872
        %875 = vset.pattern.permute.xlu0 2
        %876 = vperm.xlu0 %875, %v269
        %v877 = vpop.permute.xlu0 %876
        %879 = vset.pattern.permute.xlu0 2
        %880 = vperm.xlu0 %879, %v270
        %v881 = vpop.permute.xlu0 %880
        %883 = vset.pattern.permute.xlu0 2
        %884 = vperm.xlu0 %883, %v271
        %v885 = vpop.permute.xlu0 %884
        %v891 = vunpack.c.l.b16 %v859
        %v892 = vunpack.c.l.b16 %v860
        %v893 = vunpack.c.l.b16 %v861
        %v894 = vunpack.c.l.b16 %v862
        %v895 = vpack.c.b16 %v892, %v891
        %v896 = vpack.c.b16 %v894, %v893
        %v898 = vsel %vm729, %v895, 0
        %v901 = vsel %vm729, %v896, 0
        %903 = vmatprep.subr.bf16.mxu0 %v864
        %904 = vmatpush1.bf16.msra.mxu0 %v863
        %905 = vmatprep.subr.bf16.mxu0 %v868
        %906 = vmatpush1.bf16.msra.mxu0 %v867
        %907 = vmatprep.subr.bf16.mxu0 0
        %908 = vmatpush1.bf16.msra.mxu0 0
        %909 = vmatprep.subr.bf16.mxu0 0
        %910 = vmatpush1.bf16.msra.mxu0 0
        %911 = vmatprep.subr.bf16.mxu0 0
        %912 = vmatpush1.bf16.msra.mxu0 0
        %913 = vmatprep.subr.bf16.mxu0 0
        %914 = vmatpush1.bf16.msra.mxu0 0
        %915 = vmatprep.subr.bf16.mxu0 0
        %916 = vmatpush1.bf16.msra.mxu0 0
        %917 = vmatprep.subr.bf16.mxu0 0
        %918 = vmatpush1.bf16.msra.mxu0 0
        %919 = vmatprep.subr.bf16.mxu0 0
        %920 = vmatpush1.bf16.msra.mxu0 0
        %921 = vmatprep.subr.bf16.mxu0 0
        %922 = vmatpush1.bf16.msra.mxu0 0
        %923 = vmatprep.subr.bf16.mxu0 0
        %924 = vmatpush1.bf16.msra.mxu0 0
        %925 = vmatprep.subr.bf16.mxu0 0
        %926 = vmatpush1.bf16.msra.mxu0 0
        %927 = vmatprep.subr.bf16.mxu0 0
        %928 = vmatpush1.bf16.msra.mxu0 0
        %929 = vmatprep.subr.bf16.mxu0 0
        %930 = vmatpush1.bf16.msra.mxu0 0
        %931 = vmatprep.subr.bf16.mxu0 0
        %932 = vmatpush1.bf16.msra.mxu0 0
        %933 = vmatprep.subr.bf16.mxu0 0
        %934 = vmatpush1.bf16.msra.mxu0 0
        %935 = vmatprep.mubr.bf16.mxu0 0
        %936 = vmatmul.mubr.bf16.gmra.mrb[0].mxu0 %v898
        %v937 = vpop.f32.mrb[0].mxu0
        %v938 = vadd.f32 %v873, %v937
        %v939 = vpop.f32.mrb[0].mxu0
        %v940 = vadd.f32 %v873, %v939
        %v941 = vpop.f32.mrb[0].mxu0
        %v942 = vadd.f32 %v877, %v941
        %v943 = vpop.f32.mrb[0].mxu0
        %v944 = vadd.f32 %v877, %v943
        %945 = vmatprep.mubr.bf16.mxu0 0
        %946 = vmatmul.mubr.bf16.gmra.mrb[0].mxu0 %v901
        %v947 = vpop.f32.mrb[0].mxu0
        %v948 = vadd.f32 %v881, %v947
        %v949 = vpop.f32.mrb[0].mxu0
        %v950 = vadd.f32 %v881, %v949
        %v951 = vpop.f32.mrb[0].mxu0
        %v952 = vadd.f32 %v885, %v951
        %v953 = vpop.f32.mrb[0].mxu0
        %v954 = vadd.f32 %v885, %v953
        %955 = vdwg.mxu0
        %956 = vmatprep.subr.bf16.mxu0 %v866
        %957 = vmatpush1.bf16.msra.mxu0 %v865
        %958 = vmatprep.subr.bf16.mxu0 %v870
        %959 = vmatpush1.bf16.msra.mxu0 %v869
        %960 = vmatprep.subr.bf16.mxu0 0
        %961 = vmatpush1.bf16.msra.mxu0 0
        %962 = vmatprep.subr.bf16.mxu0 0
        %963 = vmatpush1.bf16.msra.mxu0 0
        %964 = vmatprep.subr.bf16.mxu0 0
        %965 = vmatpush1.bf16.msra.mxu0 0
        %966 = vmatprep.subr.bf16.mxu0 0
        %967 = vmatpush1.bf16.msra.mxu0 0
        %968 = vmatprep.subr.bf16.mxu0 0
        %969 = vmatpush1.bf16.msra.mxu0 0
        %970 = vmatprep.subr.bf16.mxu0 0
        %971 = vmatpush1.bf16.msra.mxu0 0
        %972 = vmatprep.subr.bf16.mxu0 0
        %973 = vmatpush1.bf16.msra.mxu0 0
        %974 = vmatprep.subr.bf16.mxu0 0
        %975 = vmatpush1.bf16.msra.mxu0 0
        %976 = vmatprep.subr.bf16.mxu0 0
        %977 = vmatpush1.bf16.msra.mxu0 0
        %978 = vmatprep.subr.bf16.mxu0 0
        %979 = vmatpush1.bf16.msra.mxu0 0
        %980 = vmatprep.subr.bf16.mxu0 0
        %981 = vmatpush1.bf16.msra.mxu0 0
        %982 = vmatprep.subr.bf16.mxu0 0
        %983 = vmatpush1.bf16.msra.mxu0 0
        %984 = vmatprep.subr.bf16.mxu0 0
        %985 = vmatpush1.bf16.msra.mxu0 0
        %986 = vmatprep.subr.bf16.mxu0 0
        %987 = vmatpush1.bf16.msra.mxu0 0
        %988 = vmatprep.mubr.bf16.mxu0 0
        %989 = vmatmul.mubr.bf16.gmra.mrb[0].mxu0 %v898
        %v990 = vpop.f32.mrb[0].mxu0
        %v991 = vadd.f32 %v873, %v990
        %v992 = vpop.f32.mrb[0].mxu0
        %v993 = vadd.f32 %v873, %v992
        %v994 = vpop.f32.mrb[0].mxu0
        %v995 = vadd.f32 %v877, %v994
        %v996 = vpop.f32.mrb[0].mxu0
        %v997 = vadd.f32 %v877, %v996
        %998 = vmatprep.mubr.bf16.mxu0 0
        %999 = vmatmul.mubr.bf16.gmra.mrb[0].mxu0 %v901
        %v1000 = vpop.f32.mrb[0].mxu0
        %v1001 = vadd.f32 %v881, %v1000
        %v1002 = vpop.f32.mrb[0].mxu0
        %v1003 = vadd.f32 %v881, %v1002
        %v1004 = vpop.f32.mrb[0].mxu0
        %v1005 = vadd.f32 %v885, %v1004
        %v1006 = vpop.f32.mrb[0].mxu0
        %v1007 = vadd.f32 %v885, %v1006
        %1008 = vdwg.mxu0
        %v1009 = vmax.f32 %v938, 0.0
        %v1010 = vmax.f32 %v940, 0.0
        %v1011 = vmax.f32 %v991, 0.0
        %v1012 = vmax.f32 %v993, 0.0
        %v1013 = vmax.f32 %v942, 0.0
        %v1014 = vmax.f32 %v944, 0.0
        %v1015 = vmax.f32 %v995, 0.0
        %v1016 = vmax.f32 %v997, 0.0
        %v1017 = vmax.f32 %v948, 0.0
        %v1018 = vmax.f32 %v950, 0.0
        %v1019 = vmax.f32 %v1001, 0.0
        %v1020 = vmax.f32 %v1003, 0.0
        %v1021 = vmax.f32 %v952, 0.0
        %v1022 = vmax.f32 %v954, 0.0
        %v1023 = vmax.f32 %v1005, 0.0
        %v1024 = vmax.f32 %v1007, 0.0
        %v1025 = vld [vmem:[%s3] sm:$0x1]
        %1026 = vset.pattern.permute.xlu0 3
        %1027 = vperm.xlu0 %1026, %v268
        %v1028 = vpop.permute.xlu0 %1027
        %1030 = vset.pattern.permute.xlu0 3
        %1031 = vperm.xlu0 %1030, %v269
        %v1032 = vpop.permute.xlu0 %1031
        %1034 = vset.pattern.permute.xlu0 3
        %1035 = vperm.xlu0 %1034, %v270
        %v1036 = vpop.permute.xlu0 %1035
        %1038 = vset.pattern.permute.xlu0 3
        %1039 = vperm.xlu0 %1038, %v271
        %v1040 = vpop.permute.xlu0 %1039
        %v1042 = vmul.f32 %v1009, %v1028
        %v1043 = vmul.f32 %v1010, %v1028
        %v1044 = vmul.f32 %v1011, %v1028
        %v1045 = vmul.f32 %v1012, %v1028
        %v1046 = vmul.f32 %v1013, %v1032
        %v1047 = vmul.f32 %v1014, %v1032
        %v1048 = vmul.f32 %v1015, %v1032
        %v1049 = vmul.f32 %v1016, %v1032
        %v1050 = vmul.f32 %v1017, %v1036
        %v1051 = vmul.f32 %v1018, %v1036
        %v1052 = vmul.f32 %v1019, %v1036
        %v1053 = vmul.f32 %v1020, %v1036
        %v1054 = vmul.f32 %v1021, %v1040
        %v1055 = vmul.f32 %v1022, %v1040
        %v1056 = vmul.f32 %v1023, %v1040
        %v1057 = vmul.f32 %v1024, %v1040
        %v1058 = vadd.f32 %v1042, %v1046
        %v1059 = vadd.f32 %v1058, %v1050
        %v1060 = vadd.f32 %v1059, %v1054
        %v1061 = vrot.slane %v1060, 4
        %v1062 = vadd.f32 %v1060, %v1061
        %v1063 = vrot.slane %v1062, 2
        %v1064 = vadd.f32 %v1062, %v1063
        %v1065 = vrot.slane %v1064, 1
        %v1066 = vadd.f32 %v1064, %v1065
        %v1067 = vadd.f32 %v1043, %v1047
        %v1068 = vadd.f32 %v1067, %v1051
        %v1069 = vadd.f32 %v1068, %v1055
        %v1070 = vrot.slane %v1069, 4
        %v1071 = vadd.f32 %v1069, %v1070
        %v1072 = vrot.slane %v1071, 2
        %v1073 = vadd.f32 %v1071, %v1072
        %v1074 = vrot.slane %v1073, 1
        %v1075 = vadd.f32 %v1073, %v1074
        %v1076 = vadd.f32 %v1044, %v1048
        %v1077 = vadd.f32 %v1076, %v1052
        %v1078 = vadd.f32 %v1077, %v1056
        %v1079 = vrot.slane %v1078, 4
        %v1080 = vadd.f32 %v1078, %v1079
        %v1081 = vrot.slane %v1080, 2
        %v1082 = vadd.f32 %v1080, %v1081
        %v1083 = vrot.slane %v1082, 1
        %v1084 = vadd.f32 %v1082, %v1083
        %v1085 = vadd.f32 %v1045, %v1049
        %v1086 = vadd.f32 %v1085, %v1053
        %v1087 = vadd.f32 %v1086, %v1057
        %v1088 = vrot.slane %v1087, 4
        %v1089 = vadd.f32 %v1087, %v1088
        %v1090 = vrot.slane %v1089, 2
        %v1091 = vadd.f32 %v1089, %v1090
        %v1092 = vrot.slane %v1091, 1
        %v1093 = vadd.f32 %v1091, %v1092
        %1095 = vset.pattern.permute.xlu0 4
        %1096 = vperm.xlu0 %1095, %v1025
        %v1097 = vpop.permute.xlu0 %1096
        %v1099 = vadd.f32 %v1066, %v1097
        %v1100 = vadd.f32 %v1075, %v1097
        %v1101 = vadd.f32 %v1084, %v1097
        %v1102 = vadd.f32 %v1093, %v1097
        %v1107 = vcombine.low %v1099, %v1100
        %v1108 = vcombine.low %v1101, %v1102
        %v1110 = vunpack.c.l.s4 1966171168
        %v1111 = vunpack.c.0.s8 %v1110
        %v1112 = vlaneseq
        %v1113 = vshrl.u32 %v1112, 7
        %v1114 = vsub.s32 %v1111, %v1113
        %v1115 = vrot.slane %v1107, %v1114
        %v1117 = vunpack.c.l.s4 1966171168
        %v1118 = vunpack.c.0.s8 %v1117
        %v1119 = vlaneseq
        %v1120 = vshrl.u32 %v1119, 7
        %v1121 = vsub.s32 %v1118, %v1120
        %v1122 = vrot.slane %v1108, %v1121
        %v1123 = vcombine.low %v1115, %v1122
        %v1125 = vunpack.c.l.s4 1966171168
        %v1126 = vunpack.c.0.s8 %v1125
        %v1127 = vlaneseq
        %v1128 = vshrl.u32 %v1127, 7
        %v1129 = vsub.s32 %v1126, %v1128
        %v1130 = vrot.slane %v1123, %v1129
        %v1132 = vlaneseq
        %vm1133 = vcmp.ge.s32.totalorder %v1132, 0
        %vm1134 = vcmp.lt.s32.totalorder %v1132, 512
        %vm1135 = vmand %vm1133, %vm1134
        %1136 = vst.msk [vmem:[%s191] sm:$0xf] %vm1135, %v1130
        %s1137 = sand.u32 %s115, 1
        %s1138 = scalar_lea.sflag [#allocation3], %s1137
        %s1139 = sand.u32 %s115, 1
        %s1140 = smul.addr %s1139, 4
        %s1141 = scalar_lea.vmem [#allocation2], %s1140
        // Predicated region
        $region37: #{_msd_sdf_forward_impl.1} parent=35 // pred_check
          %p1142 = pneg %p125
        $region38: #{_msd_sdf_forward_impl.1} parent=35 // pred_check_branch
          %1144 = sbr.rel (%p1142) target = $region40
        $region39: #{_msd_sdf_forward_impl.1} parent=35 // pred_region
          %s1145 = smul.u32 4, %s18
          %s1147 = ssub.s32 64, 64
          %1148 = vsyncadd %s1138, %s1147
          %s1149 = smul.addr %s1145, 16
          %s1150 = scalar_lea.hbm %s4, %s1149
          %s1152 = sshll.u32 %s1141, 4
          %s1153 = int_to_ptr.vmem [resolvable:$true] %s1152
          %1155 = dma.vmem_to_hbm [thread:$0]  %s1153, 64, %s1150, %s1138
        $region40: #{_msd_sdf_forward_impl.1} parent=35 // pred_fallthru
          _
      $region36: #{_msd_sdf_forward_impl.1} parent=5 // pred_fallthru
        _
      %p1156 = scmp.le.s32.totalorder 2, %s13
      // Predicated region
      $region41: #{_msd_sdf_forward_impl.1} parent=5 // pred_check
        %p1157 = pneg %p1156
      $region42: #{_msd_sdf_forward_impl.1} parent=5 // pred_check_branch
        %1159 = sbr.rel (%p1157) target = $region44
      $region43: #{_msd_sdf_forward_impl.1} parent=5 // pred_region
        %s1160 = ssub.s32 %s13, 2
        // Predicated region
        $region45: #{_msd_sdf_forward_impl.1} parent=43 // pred_check
          %p1161 = pneg %p131
        $region46: #{_msd_sdf_forward_impl.1} parent=43 // pred_check_branch
          %1163 = sbr.rel (%p1161) target = $region48
        $region47: #{_msd_sdf_forward_impl.1} parent=43 // pred_region
          %s1164 = sand.u32 %s116, 1
          %s1165 = scalar_lea.sflag [#allocation3], %s1164
          %s1166 = sand.u32 %s116, 1
          %s1167 = smul.addr %s1166, 4
          %s1168 = scalar_lea.vmem [#allocation2], %s1167
          %1169 = dma.done %s1165, 64
        $region48: #{_msd_sdf_forward_impl.1} parent=43 // pred_fallthru
          _
      $region44: #{_msd_sdf_forward_impl.1} parent=5 // pred_fallthru
        _
    $region6: #{_msd_sdf_forward_impl.1} parent=1 // loop_footer
      %s17 = sadd.s32 1, %s13
    $region7: #{_msd_sdf_forward_impl.1} parent=1 // loop_footer_branch
      %12 = sbr.rel target = $region3
    $region8: #{_msd_sdf_forward_impl.1} parent=1 // loop_exit
      _
    %1170 = vsyncpa [#allocation3], 1
    %s1171 = scalar_lea.sflag [#allocation3], 1
    %1172 = vsyncpa %s1171, 1

// kernel: _msd_sdf_forward_impl.1
$region0: #{_msd_sdf_forward_impl.1}
  #allocation0 [shape = 'u32[]', space=smem, size = 0x4, offset = 0x4, fixed_abs, tag = 'smem constant byte address 0x4 - core index']
  #allocation1 [shape = 'u32[144,128]{1,0:T(1,128)}', space=vmem, size = 0x12000, scoped, tag = 'internal scratch']
  %s0 = inlined_call_operand.vmem [shape: f32[1024,16], index: 0, kind: input, shape index: {}]
  %s1 = inlined_call_operand.vmem [shape: f32[32,16], index: 1, kind: input, shape index: {}]
  %s2 = inlined_call_operand.vmem [shape: bf16[2,32,32], index: 2, kind: input, shape index: {}]
  %s3 = inlined_call_operand.vmem [shape: f32[32,5], index: 3, kind: input, shape index: {}]
  %s4 = inlined_call_operand.hbm [shape: f32[1,1024], index: 4, kind: output, shape index: {}]
  %s5 = sld [smem:[#allocation0]]
  $region49: #{_msd_sdf_forward_impl.1} parent=0
    _
  %s7 = ssub.s32 1, %s5
  %s8 = scalar_select 0, %s7, %s5
  $region1: #{_msd_sdf_forward_impl.1} parent=0
    #allocation2 [shape = 'u8[4096]{0}', space=vmem, size = 0x1000, scoped, tag = 'output window, operand 0']
    #allocation3 [shape = 's32[2]{0}', space=sflag, size = 0x8, scoped, tag = 'scoped memory for _msd_sdf_forward_impl.1']
    %9 = vsyncpa [#allocation3], 0
    %s10 = scalar_lea.sflag [#allocation3], 1
    %11 = vsyncpa %s10, 0
    loop: start=0, step=1, limit=4
    $region2: #{_msd_sdf_forward_impl.1} parent=1 // loop_pre_header
      _
    $region3: #{_msd_sdf_forward_impl.1} parent=1 // loop_header
      %s13 = sphi 0, %s17
      %p14 = scmp.ge.s32.totalorder %s13, 4
      %s23 = sphi 0, %s25
      %s26 = sphi 0, %s23
      %s27 = sphi 0, %s26
      %s43 = sphi 0, %s27
      %s47 = sphi 0, %s47
      %s49 = sphi 0, %s47
      %s50 = sphi 0, %s49
      %s64 = sphi 0, %s50
      %s68 = sphi 0, %s68
      %s70 = sphi 0, %s68
      %s71 = sphi 0, %s70
      %s85 = sphi 0, %s71
      %s89 = sphi 0, %s89
      %s91 = sphi 0, %s89
      %s92 = sphi 0, %s91
      %s106 = sphi 0, %s92
      %s112 = sphi 0, %s114
      %s115 = sphi 0, %s112
      %s116 = sphi 0, %s115
      %s132 = sphi 0, %s116
    $region4: #{_msd_sdf_forward_impl.1} parent=1 // loop_header_branch
      %16 = sbr.rel (%p14) target = $region8
    $region5: #{_msd_sdf_forward_impl.1} parent=1 // loop_body
      %s18 = ssub.s32 %s13, 1
      %s19 = ssub.s32 %s13, 2
      %s20 = sadd.s32 %s13, 1
      %s21 = ssub.s32 %s13, %s20
      %p22 = scmp.eq.s32.totalorder %s21, 0
      %s24 = sadd.s32 %s23, 1
      %s25 = scalar_select %p22, %s23, %s24
      %p28 = pneg %p22
      %p29 = scmp.eq.s32.totalorder %s13, 1
      %p30 = por %p28, %p29
      %p31 = scmp.ne.s32.totalorder %s23, %s26
      %p32 = scmp.eq.s32.totalorder %s13, 0
      %p33 = por %p31, %p32
      %p34 = scmp.ne.s32.totalorder %s23, %s26
      %p35 = scmp.eq.s32.totalorder %s18, 1
      %p36 = por %p34, %p35
      %p37 = scmp.ne.s32.totalorder %s26, %s27
      %p38 = scmp.eq.s32.totalorder %s18, 0
      %p39 = por %p37, %p38
      %p40 = scmp.ne.s32.totalorder %s26, %s27
      %p41 = scmp.eq.s32.totalorder %s19, 1
      %p42 = por %p40, %p41
      %p44 = scmp.ne.s32.totalorder %s27, %s43
      %p45 = scmp.eq.s32.totalorder %s19, 0
      %p46 = por %p44, %p45
      %s48 = sadd.s32 %s47, 1
      %p51 = scmp.eq.s32.totalorder %s13, 1
      %p52 = scmp.ne.s32.totalorder %s47, %s49
      %p53 = scmp.eq.s32.totalorder %s13, 0
      %p54 = por %p52, %p53
      %p55 = scmp.ne.s32.totalorder %s47, %s49
      %p56 = scmp.eq.s32.totalorder %s18, 1
      %p57 = por %p55, %p56
      %p58 = scmp.ne.s32.totalorder %s49, %s50
      %p59 = scmp.eq.s32.totalorder %s18, 0
      %p60 = por %p58, %p59
      %p61 = scmp.ne.s32.totalorder %s49, %s50
      %p62 = scmp.eq.s32.totalorder %s19, 1
      %p63 = por %p61, %p62
      %p65 = scmp.ne.s32.totalorder %s50, %s64
      %p66 = scmp.eq.s32.totalorder %s19, 0
      %p67 = por %p65, %p66
      %s69 = sadd.s32 %s68, 1
      %p72 = scmp.eq.s32.totalorder %s13, 1
      %p73 = scmp.ne.s32.totalorder %s68, %s70
      %p74 = scmp.eq.s32.totalorder %s13, 0
      %p75 = por %p73, %p74
      %p76 = scmp.ne.s32.totalorder %s68, %s70
      %p77 = scmp.eq.s32.totalorder %s18, 1
      %p78 = por %p76, %p77
      %p79 = scmp.ne.s32.totalorder %s70, %s71
      %p80 = scmp.eq.s32.totalorder %s18, 0
      %p81 = por %p79, %p80
      %p82 = scmp.ne.s32.totalorder %s70, %s71
      %p83 = scmp.eq.s32.totalorder %s19, 1
      %p84 = por %p82, %p83
      %p86 = scmp.ne.s32.totalorder %s71, %s85
      %p87 = scmp.eq.s32.totalorder %s19, 0
      %p88 = por %p86, %p87
      %s90 = sadd.s32 %s89, 1
      %p93 = scmp.eq.s32.totalorder %s13, 1
      %p94 = scmp.ne.s32.totalorder %s89, %s91
      %p95 = scmp.eq.s32.totalorder %s13, 0
      %p96 = por %p94, %p95
      %p97 = scmp.ne.s32.totalorder %s89, %s91
      %p98 = scmp.eq.s32.totalorder %s18, 1
      %p99 = por %p97, %p98
      %p100 = scmp.ne.s32.totalorder %s91, %s92
      %p101 = scmp.eq.s32.totalorder %s18, 0
      %p102 = por %p100, %p101
      %p103 = scmp.ne.s32.totalorder %s91, %s92
      %p104 = scmp.eq.s32.totalorder %s19, 1
      %p105 = por %p103, %p104
      %p107 = scmp.ne.s32.totalorder %s92, %s106
      %p108 = scmp.eq.s32.totalorder %s19, 0
      %p109 = por %p107, %p108
      %s110 = ssub.s32 %s13, %s20
      %p111 = scmp.eq.s32.totalorder %s110, 0
      %s113 = sadd.s32 %s112, 1
      %s114 = scalar_select %p111, %s112, %s113
      %p117 = pneg %p111
      %p118 = scmp.eq.s32.totalorder %s13, 1
      %p119 = por %p117, %p118
      %p120 = scmp.ne.s32.totalorder %s112, %s115
      %p121 = scmp.eq.s32.totalorder %s13, 0
      %p122 = por %p120, %p121
      %p123 = scmp.ne.s32.totalorder %s112, %s115
      %p124 = scmp.eq.s32.totalorder %s18, 1
      %p125 = por %p123, %p124
      %p126 = scmp.ne.s32.totalorder %s115, %s116
      %p127 = scmp.eq.s32.totalorder %s18, 0
      %p128 = por %p126, %p127
      %p129 = scmp.ne.s32.totalorder %s115, %s116
      %p130 = scmp.eq.s32.totalorder %s19, 1
      %p131 = por %p129, %p130
      %p133 = scmp.ne.s32.totalorder %s116, %s132
      %p134 = scmp.eq.s32.totalorder %s19, 0
      %p135 = por %p133, %p134
      %p136 = scmp.le.s32.totalorder 1, %s13
      %p137 = scmp.lt.s32.totalorder %s13, 3
      %p138 = pnand %p136, %p137
      %p139 = pneg %p138
      // Predicated region
      $region9: #{_msd_sdf_forward_impl.1} parent=5 // pred_check
        _
      $region10: #{_msd_sdf_forward_impl.1} parent=5 // pred_check_branch
        %141 = sbr.rel (%p138) target = $region12
      $region11: #{_msd_sdf_forward_impl.1} parent=5 // pred_region
        %s142 = ssub.s32 %s13, 1
        // Predicated region
        $region13: #{_msd_sdf_forward_impl.1} parent=11 // pred_check
          %p143 = pneg %p60
        $region14: #{_msd_sdf_forward_impl.1} parent=11 // pred_check_branch
          %145 = sbr.rel (%p143) target = $region16
        $region15: #{_msd_sdf_forward_impl.1} parent=11 // pred_region
          _
        $region16: #{_msd_sdf_forward_impl.1} parent=11 // pred_fallthru
          _
        // Predicated region
        $region17: #{_msd_sdf_forward_impl.1} parent=11 // pred_check
          %p146 = pneg %p81
        $region18: #{_msd_sdf_forward_impl.1} parent=11 // pred_check_branch
          %148 = sbr.rel (%p146) target = $region20
        $region19: #{_msd_sdf_forward_impl.1} parent=11 // pred_region
          _
        $region20: #{_msd_sdf_forward_impl.1} parent=11 // pred_fallthru
          _
        // Predicated region
        $region21: #{_msd_sdf_forward_impl.1} parent=11 // pred_check
          %p149 = pneg %p102
        $region22: #{_msd_sdf_forward_impl.1} parent=11 // pred_check_branch
          %151 = sbr.rel (%p149) target = $region24
        $region23: #{_msd_sdf_forward_impl.1} parent=11 // pred_region
          _
        $region24: #{_msd_sdf_forward_impl.1} parent=11 // pred_fallthru
          _
      $region12: #{_msd_sdf_forward_impl.1} parent=5 // pred_fallthru
        _
      %p152 = scmp.lt.s32.totalorder %s13, 2
      // Predicated region
      $region25: #{_msd_sdf_forward_impl.1} parent=5 // pred_check
        %p153 = pneg %p152
      $region26: #{_msd_sdf_forward_impl.1} parent=5 // pred_check_branch
        %155 = sbr.rel (%p153) target = $region28
      $region27: #{_msd_sdf_forward_impl.1} parent=5 // pred_region
        // Predicated region
        $region29: #{_msd_sdf_forward_impl.1} parent=27 // pred_check
          %p156 = pneg %p33
        $region30: #{_msd_sdf_forward_impl.1} parent=27 // pred_check_branch
          %158 = sbr.rel (%p156) target = $region32
        $region31: #{_msd_sdf_forward_impl.1} parent=27 // pred_region
          %s159 = smul.u32 64, %s13
          %p160 = scmp.lt.s32.totalorder %s159, 127
          %s161 = scalar_select %p160, %s159, 127
          %s162 = smul.addr %s161, 8
          %s163 = scalar_lea.vmem %s0, %s162
          %s164 = smul.u32 64, %s13
        $region32: #{_msd_sdf_forward_impl.1} parent=27 // pred_fallthru
          _
      $region28: #{_msd_sdf_forward_impl.1} parent=5 // pred_fallthru
        _
      %p165 = scmp.le.s32.totalorder 1, %s13
      %p166 = scmp.lt.s32.totalorder %s13, 3
      %p167 = pnand %p165, %p166
      %p168 = pneg %p167
      // Predicated region
      $region33: #{_msd_sdf_forward_impl.1} parent=5 // pred_check
        _
      $region34: #{_msd_sdf_forward_impl.1} parent=5 // pred_check_branch
        %170 = sbr.rel (%p167) target = $region36
      $region35: #{_msd_sdf_forward_impl.1} parent=5 // pred_region
        %s171 = ssub.s32 %s13, 1
        %s172 = smul.u32 64, %s18
        %p173 = scmp.lt.s32.totalorder %s172, 127
        %s174 = scalar_select %p173, %s172, 127
        %s175 = smul.addr %s174, 8
        %s176 = scalar_lea.vmem %s0, %s175
        %p177 = pneg %p39
        %p178 = pneg %p36
        %p179 = pneg %p60
        %p180 = pneg %p57
        %p181 = pneg %p81
        %p182 = pneg %p78
        %p183 = pneg %p102
        %p184 = pneg %p99
        %p185 = pneg %p128
        %p186 = pneg %p125
        %s187 = sand.u32 %s115, 1
        %s188 = scalar_lea.sflag [#allocation3], %s187
        %s189 = sand.u32 %s115, 1
        %s190 = smul.addr %s189, 4
        %s191 = scalar_lea.vmem [#allocation2], %s190
        %s192 = smul.u32 64, %s18
        %p193 = scmp.lt.s32.totalorder %s192, 127
        %s194 = scalar_select %p193, %s192, 127
        %s195 = smul.addr %s194, 8
        %s196 = scalar_lea.vmem %s0, %s195
        %s197 = smul.u32 64, %s18
        %s198 = smul.u32 4, %s18
        %v200 = vld [vmem:[%s1] sm:$0xff]
        %v201 = vld [vmem:[%s1 + $0x8] sm:$0xff]
        %v202 = vld [vmem:[%s1 + $0x10] sm:$0xff]
        %v203 = vld [vmem:[%s1 + $0x18] sm:$0xff]
        %v204 = vld [vmem:[%s196] sm:$0xff]
        %v205 = vld [vmem:[%s196 + $0x8] sm:$0xff]
        %v206 = vld [vmem:[%s196 + $0x10] sm:$0xff]
        %v207 = vld [vmem:[%s196 + $0x18] sm:$0xff]
        %v208 = vld [vmem:[%s196 + $0x20] sm:$0xff]
        %v209 = vld [vmem:[%s196 + $0x28] sm:$0xff]
        %v210 = vld [vmem:[%s196 + $0x30] sm:$0xff]
        %v211 = vld [vmem:[%s196 + $0x38] sm:$0xff]
        %v212 = vld [vmem:[%s196 + $0x40] sm:$0xff]
        %v213 = vld [vmem:[%s196 + $0x48] sm:$0xff]
        %v214 = vld [vmem:[%s196 + $0x50] sm:$0xff]
        %v215 = vld [vmem:[%s196 + $0x58] sm:$0xff]
        %v216 = vld [vmem:[%s196 + $0x60] sm:$0xff]
        %v217 = vld [vmem:[%s196 + $0x68] sm:$0xff]
        %v218 = vld [vmem:[%s196 + $0x70] sm:$0xff]
        %v219 = vld [vmem:[%s196 + $0x78] sm:$0xff]
        %v220 = vld [vmem:[%s196 + $0x80] sm:$0xff]
        %v221 = vld [vmem:[%s196 + $0x88] sm:$0xff]
        %v222 = vld [vmem:[%s196 + $0x90] sm:$0xff]
        %v223 = vld [vmem:[%s196 + $0x98] sm:$0xff]
        %v224 = vld [vmem:[%s196 + $0xa0] sm:$0xff]
        %v225 = vld [vmem:[%s196 + $0xa8] sm:$0xff]
        %v226 = vld [vmem:[%s196 + $0xb0] sm:$0xff]
        %v227 = vld [vmem:[%s196 + $0xb8] sm:$0xff]
        %v228 = vld [vmem:[%s196 + $0xc0] sm:$0xff]
        %v229 = vld [vmem:[%s196 + $0xc8] sm:$0xff]
        %v230 = vld [vmem:[%s196 + $0xd0] sm:$0xff]
        %v231 = vld [vmem:[%s196 + $0xd8] sm:$0xff]
        %v232 = vld [vmem:[%s196 + $0xe0] sm:$0xff]
        %v233 = vld [vmem:[%s196 + $0xe8] sm:$0xff]
        %v234 = vld [vmem:[%s196 + $0xf0] sm:$0xff]
        %v235 = vld [vmem:[%s196 + $0xf8] sm:$0xff]
        %v236 = vld [vmem:[%s196 + $0x100] sm:$0xff]
        %v237 = vld [vmem:[%s196 + $0x108] sm:$0xff]
        %v238 = vld [vmem:[%s196 + $0x110] sm:$0xff]
        %v239 = vld [vmem:[%s196 + $0x118] sm:$0xff]
        %v240 = vld [vmem:[%s196 + $0x120] sm:$0xff]
        %v241 = vld [vmem:[%s196 + $0x128] sm:$0xff]
        %v242 = vld [vmem:[%s196 + $0x130] sm:$0xff]
        %v243 = vld [vmem:[%s196 + $0x138] sm:$0xff]
        %v244 = vld [vmem:[%s196 + $0x140] sm:$0xff]
        %v245 = vld [vmem:[%s196 + $0x148] sm:$0xff]
        %v246 = vld [vmem:[%s196 + $0x150] sm:$0xff]
        %v247 = vld [vmem:[%s196 + $0x158] sm:$0xff]
        %v248 = vld [vmem:[%s196 + $0x160] sm:$0xff]
        %v249 = vld [vmem:[%s196 + $0x168] sm:$0xff]
        %v250 = vld [vmem:[%s196 + $0x170] sm:$0xff]
        %v251 = vld [vmem:[%s196 + $0x178] sm:$0xff]
        %v252 = vld [vmem:[%s196 + $0x180] sm:$0xff]
        %v253 = vld [vmem:[%s196 + $0x188] sm:$0xff]
        %v254 = vld [vmem:[%s196 + $0x190] sm:$0xff]
        %v255 = vld [vmem:[%s196 + $0x198] sm:$0xff]
        %v256 = vld [vmem:[%s196 + $0x1a0] sm:$0xff]
        %v257 = vld [vmem:[%s196 + $0x1a8] sm:$0xff]
        %v258 = vld [vmem:[%s196 + $0x1b0] sm:$0xff]
        %v259 = vld [vmem:[%s196 + $0x1b8] sm:$0xff]
        %v260 = vld [vmem:[%s196 + $0x1c0] sm:$0xff]
        %v261 = vld [vmem:[%s196 + $0x1c8] sm:$0xff]
        %v262 = vld [vmem:[%s196 + $0x1d0] sm:$0xff]
        %v263 = vld [vmem:[%s196 + $0x1d8] sm:$0xff]
        %v264 = vld [vmem:[%s196 + $0x1e0] sm:$0xff]
        %v265 = vld [vmem:[%s196 + $0x1e8] sm:$0xff]
        %v266 = vld [vmem:[%s196 + $0x1f0] sm:$0xff]
        %v267 = vld [vmem:[%s196 + $0x1f8] sm:$0xff]
        %v268 = vld [vmem:[%s3] sm:$0xff]
        %v269 = vld [vmem:[%s3 + $0x8] sm:$0xff]
        %v270 = vld [vmem:[%s3 + $0x10] sm:$0xff]
        %v271 = vld [vmem:[%s3 + $0x18] sm:$0xff]
        %273 = vset.pattern.permute.xlu0 0
        %274 = vperm.xlu0 %273, %v268
        %v275 = vpop.permute.xlu0 %274
        %278 = vset.pattern.permute.xlu0 0
        %279 = vperm.xlu0 %278, %v269
        %v280 = vpop.permute.xlu0 %279
        %283 = vset.pattern.permute.xlu0 0
        %284 = vperm.xlu0 %283, %v270
        %v285 = vpop.permute.xlu0 %284
        %288 = vset.pattern.permute.xlu0 0
        %289 = vperm.xlu0 %288, %v271
        %v290 = vpop.permute.xlu0 %289
        %vm292 = vcmask 130048
        %v294 = vsel %vm292, %v200, 0
        %v297 = vsel %vm292, %v201, 0
        %v300 = vsel %vm292, %v202, 0
        %v303 = vsel %vm292, %v203, 0
        %v306 = vsel %vm292, %v204, 0
        %v309 = vsel %vm292, %v205, 0
        %v312 = vsel %vm292, %v206, 0
        %v315 = vsel %vm292, %v207, 0
        %v318 = vsel %vm292, %v208, 0
        %v321 = vsel %vm292, %v209, 0
        %v324 = vsel %vm292, %v210, 0
        %v327 = vsel %vm292, %v211, 0
        %v330 = vsel %vm292, %v212, 0
        %v333 = vsel %vm292, %v213, 0
        %v336 = vsel %vm292, %v214, 0
        %v339 = vsel %vm292, %v215, 0
        %v342 = vsel %vm292, %v216, 0
        %v345 = vsel %vm292, %v217, 0
        %v348 = vsel %vm292, %v218, 0
        %v351 = vsel %vm292, %v219, 0
        %v354 = vsel %vm292, %v220, 0
        %v357 = vsel %vm292, %v221, 0
        %v360 = vsel %vm292, %v222, 0
        %v363 = vsel %vm292, %v223, 0
        %v366 = vsel %vm292, %v224, 0
        %v369 = vsel %vm292, %v225, 0
        %v372 = vsel %vm292, %v226, 0
        %v375 = vsel %vm292, %v227, 0
        %v378 = vsel %vm292, %v228, 0
        %v381 = vsel %vm292, %v229, 0
        %v384 = vsel %vm292, %v230, 0
        %v387 = vsel %vm292, %v231, 0
        %v390 = vsel %vm292, %v232, 0
        %v393 = vsel %vm292, %v233, 0
        %v396 = vsel %vm292, %v234, 0
        %v399 = vsel %vm292, %v235, 0
        %v402 = vsel %vm292, %v236, 0
        %v405 = vsel %vm292, %v237, 0
        %v408 = vsel %vm292, %v238, 0
        %v411 = vsel %vm292, %v239, 0
        %v414 = vsel %vm292, %v240, 0
        %v417 = vsel %vm292, %v241, 0
        %v420 = vsel %vm292, %v242, 0
        %v423 = vsel %vm292, %v243, 0
        %v426 = vsel %vm292, %v244, 0
        %v429 = vsel %vm292, %v245, 0
        %v432 = vsel %vm292, %v246, 0
        %v435 = vsel %vm292, %v247, 0
        %v438 = vsel %vm292, %v248, 0
        %v441 = vsel %vm292, %v249, 0
        %v444 = vsel %vm292, %v250, 0
        %v447 = vsel %vm292, %v251, 0
        %v450 = vsel %vm292, %v252, 0
        %v453 = vsel %vm292, %v253, 0
        %v456 = vsel %vm292, %v254, 0
        %v459 = vsel %vm292, %v255, 0
        %v462 = vsel %vm292, %v256, 0
        %v465 = vsel %vm292, %v257, 0
        %v468 = vsel %vm292, %v258, 0
        %v471 = vsel %vm292, %v259, 0
        %v474 = vsel %vm292, %v260, 0
        %v477 = vsel %vm292, %v261, 0
        %v480 = vsel %vm292, %v262, 0
        %v483 = vsel %vm292, %v263, 0
        %v486 = vsel %vm292, %v264, 0
        %v489 = vsel %vm292, %v265, 0
        %v492 = vsel %vm292, %v266, 0
        %v495 = vsel %vm292, %v267, 0
        %497 = vmatprep.subr.mxu0 0.0
        %498 = vmatpush1.xpose.msra.mxu0 %v306
        %499 = vmatprep.subr.mxu0 0.0
        %500 = vmatpush1.xpose.msra.mxu0 %v309
        %501 = vmatprep.subr.mxu0 0.0
        %502 = vmatpush1.xpose.msra.mxu0 %v312
        %503 = vmatprep.subr.mxu0 0.0
        %504 = vmatpush1.xpose.msra.mxu0 %v315
        %505 = vmatprep.subr.mxu0 0.0
        %506 = vmatpush1.xpose.msra.mxu0 %v318
        %507 = vmatprep.subr.mxu0 0.0
        %508 = vmatpush1.xpose.msra.mxu0 %v321
        %509 = vmatprep.subr.mxu0 0.0
        %510 = vmatpush1.xpose.msra.mxu0 %v324
        %511 = vmatprep.subr.mxu0 0.0
        %512 = vmatpush1.xpose.msra.mxu0 %v327
        %513 = vmatprep.subr.mxu0 0.0
        %514 = vmatpush1.xpose.msra.mxu0 %v330
        %515 = vmatprep.subr.mxu0 0.0
        %516 = vmatpush1.xpose.msra.mxu0 %v333
        %517 = vmatprep.subr.mxu0 0.0
        %518 = vmatpush1.xpose.msra.mxu0 %v336
        %519 = vmatprep.subr.mxu0 0.0
        %520 = vmatpush1.xpose.msra.mxu0 %v339
        %521 = vmatprep.subr.mxu0 0.0
        %522 = vmatpush1.xpose.msra.mxu0 %v342
        %523 = vmatprep.subr.mxu0 0.0
        %524 = vmatpush1.xpose.msra.mxu0 %v345
        %525 = vmatprep.subr.mxu0 0.0
        %526 = vmatpush1.xpose.msra.mxu0 %v348
        %527 = vmatprep.subr.mxu0 0.0
        %528 = vmatpush1.xpose.msra.mxu0 %v351
        %529 = vmatprep.subr.mxu0 0.0
        %530 = vmatpush1.xpose.msra.mxu0 %v354
        %531 = vmatprep.subr.mxu0 0.0
        %532 = vmatpush1.xpose.msra.mxu0 %v357
        %533 = vmatprep.subr.mxu0 0.0
        %534 = vmatpush1.xpose.msra.mxu0 %v360
        %535 = vmatprep.subr.mxu0 0.0
        %536 = vmatpush1.xpose.msra.mxu0 %v363
        %537 = vmatprep.subr.mxu0 0.0
        %538 = vmatpush1.xpose.msra.mxu0 %v366
        %539 = vmatprep.subr.mxu0 0.0
        %540 = vmatpush1.xpose.msra.mxu0 %v369
        %541 = vmatprep.subr.mxu0 0.0
        %542 = vmatpush1.xpose.msra.mxu0 %v372
        %543 = vmatprep.subr.mxu0 0.0
        %544 = vmatpush1.xpose.msra.mxu0 %v375
        %545 = vmatprep.subr.mxu0 0.0
        %546 = vmatpush1.xpose.msra.mxu0 %v378
        %547 = vmatprep.subr.mxu0 0.0
        %548 = vmatpush1.xpose.msra.mxu0 %v381
        %549 = vmatprep.subr.mxu0 0.0
        %550 = vmatpush1.xpose.msra.mxu0 %v384
        %551 = vmatprep.subr.mxu0 0.0
        %552 = vmatpush1.xpose.msra.mxu0 %v387
        %553 = vmatprep.subr.mxu0 0.0
        %554 = vmatpush1.xpose.msra.mxu0 %v390
        %555 = vmatprep.subr.mxu0 0.0
        %556 = vmatpush1.xpose.msra.mxu0 %v393
        %557 = vmatprep.subr.mxu0 0.0
        %558 = vmatpush1.xpose.msra.mxu0 %v396
        %559 = vmatprep.subr.mxu0 0.0
        %560 = vmatpush1.xpose.msra.mxu0 %v399
        %561 = vmatprep.mubr.f32.mxu0 0.0
        %562 = vmatmul.mubr.f32.gmra.mrb[0].mxu0 %v294
        %v563 = vpop.f32.mrb[0].mxu0
        %v564 = vadd.f32 %v275, %v563
        %v565 = vpop.f32.mrb[0].mxu0
        %v566 = vadd.f32 %v275, %v565
        %567 = vmatprep.mubr.f32.mxu0 0.0
        %568 = vmatmul.mubr.f32.gmra.mrb[0].mxu0 %v297
        %v569 = vpop.f32.mrb[0].mxu0
        %v570 = vadd.f32 %v280, %v569
        %v571 = vpop.f32.mrb[0].mxu0
        %v572 = vadd.f32 %v280, %v571
        %573 = vmatprep.mubr.f32.mxu0 0.0
        %574 = vmatmul.mubr.f32.gmra.mrb[0].mxu0 %v300
        %v575 = vpop.f32.mrb[0].mxu0
        %v576 = vadd.f32 %v285, %v575
        %v577 = vpop.f32.mrb[0].mxu0
        %v578 = vadd.f32 %v285, %v577
        %579 = vmatprep.mubr.f32.mxu0 0.0
        %580 = vmatmul.mubr.f32.gmra.mrb[0].mxu0 %v303
        %v581 = vpop.f32.mrb[0].mxu0
        %v582 = vadd.f32 %v290, %v581
        %v583 = vpop.f32.mrb[0].mxu0
        %v584 = vadd.f32 %v290, %v583
        %585 = vdwg.mxu0
        %586 = vmatprep.subr.mxu0 0.0
        %587 = vmatpush1.xpose.msra.mxu0 %v402
        %588 = vmatprep.subr.mxu0 0.0
        %589 = vmatpush1.xpose.msra.mxu0 %v405
        %590 = vmatprep.subr.mxu0 0.0
        %591 = vmatpush1.xpose.msra.mxu0 %v408
        %592 = vmatprep.subr.mxu0 0.0
        %593 = vmatpush1.xpose.msra.mxu0 %v411
        %594 = vmatprep.subr.mxu0 0.0
        %595 = vmatpush1.xpose.msra.mxu0 %v414
        %596 = vmatprep.subr.mxu0 0.0
        %597 = vmatpush1.xpose.msra.mxu0 %v417
        %598 = vmatprep.subr.mxu0 0.0
        %599 = vmatpush1.xpose.msra.mxu0 %v420
        %600 = vmatprep.subr.mxu0 0.0
        %601 = vmatpush1.xpose.msra.mxu0 %v423
        %602 = vmatprep.subr.mxu0 0.0
        %603 = vmatpush1.xpose.msra.mxu0 %v426
        %604 = vmatprep.subr.mxu0 0.0
        %605 = vmatpush1.xpose.msra.mxu0 %v429
        %606 = vmatprep.subr.mxu0 0.0
        %607 = vmatpush1.xpose.msra.mxu0 %v432
        %608 = vmatprep.subr.mxu0 0.0
        %609 = vmatpush1.xpose.msra.mxu0 %v435
        %610 = vmatprep.subr.mxu0 0.0
        %611 = vmatpush1.xpose.msra.mxu0 %v438
        %612 = vmatprep.subr.mxu0 0.0
        %613 = vmatpush1.xpose.msra.mxu0 %v441
        %614 = vmatprep.subr.mxu0 0.0
        %615 = vmatpush1.xpose.msra.mxu0 %v444
        %616 = vmatprep.subr.mxu0 0.0
        %617 = vmatpush1.xpose.msra.mxu0 %v447
        %618 = vmatprep.subr.mxu0 0.0
        %619 = vmatpush1.xpose.msra.mxu0 %v450
        %620 = vmatprep.subr.mxu0 0.0
        %621 = vmatpush1.xpose.msra.mxu0 %v453
        %622 = vmatprep.subr.mxu0 0.0
        %623 = vmatpush1.xpose.msra.mxu0 %v456
        %624 = vmatprep.subr.mxu0 0.0
        %625 = vmatpush1.xpose.msra.mxu0 %v459
        %626 = vmatprep.subr.mxu0 0.0
        %627 = vmatpush1.xpose.msra.mxu0 %v462
        %628 = vmatprep.subr.mxu0 0.0
        %629 = vmatpush1.xpose.msra.mxu0 %v465
        %630 = vmatprep.subr.mxu0 0.0
        %631 = vmatpush1.xpose.msra.mxu0 %v468
        %632 = vmatprep.subr.mxu0 0.0
        %633 = vmatpush1.xpose.msra.mxu0 %v471
        %634 = vmatprep.subr.mxu0 0.0
        %635 = vmatpush1.xpose.msra.mxu0 %v474
        %636 = vmatprep.subr.mxu0 0.0
        %637 = vmatpush1.xpose.msra.mxu0 %v477
        %638 = vmatprep.subr.mxu0 0.0
        %639 = vmatpush1.xpose.msra.mxu0 %v480
        %640 = vmatprep.subr.mxu0 0.0
        %641 = vmatpush1.xpose.msra.mxu0 %v483
        %642 = vmatprep.subr.mxu0 0.0
        %643 = vmatpush1.xpose.msra.mxu0 %v486
        %644 = vmatprep.subr.mxu0 0.0
        %645 = vmatpush1.xpose.msra.mxu0 %v489
        %646 = vmatprep.subr.mxu0 0.0
        %647 = vmatpush1.xpose.msra.mxu0 %v492
        %648 = vmatprep.subr.mxu0 0.0
        %649 = vmatpush1.xpose.msra.mxu0 %v495
        %650 = vmatprep.mubr.f32.mxu0 0.0
        %651 = vmatmul.mubr.f32.gmra.mrb[0].mxu0 %v294
        %v652 = vpop.f32.mrb[0].mxu0
        %v653 = vadd.f32 %v275, %v652
        %v654 = vpop.f32.mrb[0].mxu0
        %v655 = vadd.f32 %v275, %v654
        %656 = vmatprep.mubr.f32.mxu0 0.0
        %657 = vmatmul.mubr.f32.gmra.mrb[0].mxu0 %v297
        %v658 = vpop.f32.mrb[0].mxu0
        %v659 = vadd.f32 %v280, %v658
        %v660 = vpop.f32.mrb[0].mxu0
        %v661 = vadd.f32 %v280, %v660
        %662 = vmatprep.mubr.f32.mxu0 0.0
        %663 = vmatmul.mubr.f32.gmra.mrb[0].mxu0 %v300
        %v664 = vpop.f32.mrb[0].mxu0
        %v665 = vadd.f32 %v285, %v664
        %v666 = vpop.f32.mrb[0].mxu0
        %v667 = vadd.f32 %v285, %v666
        %668 = vmatprep.mubr.f32.mxu0 0.0
        %669 = vmatmul.mubr.f32.gmra.mrb[0].mxu0 %v303
        %v670 = vpop.f32.mrb[0].mxu0
        %v671 = vadd.f32 %v290, %v670
        %v672 = vpop.f32.mrb[0].mxu0
        %v673 = vadd.f32 %v290, %v672
        %674 = vdwg.mxu0
        %v675 = vmax.f32 %v564, 0.0
        %v676 = vmax.f32 %v566, 0.0
        %v677 = vmax.f32 %v653, 0.0
        %v678 = vmax.f32 %v655, 0.0
        %v679 = vmax.f32 %v570, 0.0
        %v680 = vmax.f32 %v572, 0.0
        %v681 = vmax.f32 %v659, 0.0
        %v682 = vmax.f32 %v661, 0.0
        %v683 = vmax.f32 %v576, 0.0
        %v684 = vmax.f32 %v578, 0.0
        %v685 = vmax.f32 %v665, 0.0
        %v686 = vmax.f32 %v667, 0.0
        %v687 = vmax.f32 %v582, 0.0
        %v688 = vmax.f32 %v584, 0.0
        %v689 = vmax.f32 %v671, 0.0
        %v690 = vmax.f32 %v673, 0.0
        %v691 = vld [vmem:[%s2] sm:$0xf]
        %v692 = vld [vmem:[%s2 + $0x4] sm:$0xf]
        %v693 = vld [vmem:[%s2 + $0x8] sm:$0xf]
        %v694 = vld [vmem:[%s2 + $0xc] sm:$0xf]
        %v695 = vpack.c.bf16 %v679, %v675
        %v696 = vpack.c.bf16 %v680, %v676
        %v697 = vpack.c.bf16 %v681, %v677
        %v698 = vpack.c.bf16 %v682, %v678
        %v699 = vpack.c.bf16 %v687, %v683
        %v700 = vpack.c.bf16 %v688, %v684
        %v701 = vpack.c.bf16 %v689, %v685
        %v702 = vpack.c.bf16 %v690, %v686
        %703 = vset.pattern.permute.xlu0 1
        %704 = vperm.xlu0 %703, %v268
        %v705 = vpop.permute.xlu0 %704
        %707 = vset.pattern.permute.xlu0 1
        %708 = vperm.xlu0 %707, %v269
        %v709 = vpop.permute.xlu0 %708
        %711 = vset.pattern.permute.xlu0 1
        %712 = vperm.xlu0 %711, %v270
        %v713 = vpop.permute.xlu0 %712
        %715 = vset.pattern.permute.xlu0 1
        %716 = vperm.xlu0 %715, %v271
        %v717 = vpop.permute.xlu0 %716
        %v723 = vunpack.c.l.b16 %v691
        %v724 = vunpack.c.l.b16 %v692
        %v725 = vunpack.c.l.b16 %v693
        %v726 = vunpack.c.l.b16 %v694
        %v727 = vpack.c.b16 %v724, %v723
        %v728 = vpack.c.b16 %v726, %v725
        %vm729 = vcmask 261120
        %v731 = vsel %vm729, %v727, 0
        %v734 = vsel %vm729, %v728, 0
        %736 = vmatprep.subr.bf16.mxu0 %v696
        %737 = vmatpush1.bf16.msra.mxu0 %v695
        %738 = vmatprep.subr.bf16.mxu0 %v700
        %739 = vmatpush1.bf16.msra.mxu0 %v699
        %740 = vmatprep.subr.bf16.mxu0 0
        %741 = vmatpush1.bf16.msra.mxu0 0
        %742 = vmatprep.subr.bf16.mxu0 0
        %743 = vmatpush1.bf16.msra.mxu0 0
        %744 = vmatprep.subr.bf16.mxu0 0
        %745 = vmatpush1.bf16.msra.mxu0 0
        %746 = vmatprep.subr.bf16.mxu0 0
        %747 = vmatpush1.bf16.msra.mxu0 0
        %748 = vmatprep.subr.bf16.mxu0 0
        %749 = vmatpush1.bf16.msra.mxu0 0
        %750 = vmatprep.subr.bf16.mxu0 0
        %751 = vmatpush1.bf16.msra.mxu0 0
        %752 = vmatprep.subr.bf16.mxu0 0
        %753 = vmatpush1.bf16.msra.mxu0 0
        %754 = vmatprep.subr.bf16.mxu0 0
        %755 = vmatpush1.bf16.msra.mxu0 0
        %756 = vmatprep.subr.bf16.mxu0 0
        %757 = vmatpush1.bf16.msra.mxu0 0
        %758 = vmatprep.subr.bf16.mxu0 0
        %759 = vmatpush1.bf16.msra.mxu0 0
        %760 = vmatprep.subr.bf16.mxu0 0
        %761 = vmatpush1.bf16.msra.mxu0 0
        %762 = vmatprep.subr.bf16.mxu0 0
        %763 = vmatpush1.bf16.msra.mxu0 0
        %764 = vmatprep.subr.bf16.mxu0 0
        %765 = vmatpush1.bf16.msra.mxu0 0
        %766 = vmatprep.subr.bf16.mxu0 0
        %767 = vmatpush1.bf16.msra.mxu0 0
        %768 = vmatprep.mubr.bf16.mxu0 0
        %769 = vmatmul.mubr.bf16.gmra.mrb[0].mxu0 %v731
        %v770 = vpop.f32.mrb[0].mxu0
        %v771 = vadd.f32 %v705, %v770
        %v772 = vpop.f32.mrb[0].mxu0
        %v773 = vadd.f32 %v705, %v772
        %v774 = vpop.f32.mrb[0].mxu0
        %v775 = vadd.f32 %v709, %v774
        %v776 = vpop.f32.mrb[0].mxu0
        %v777 = vadd.f32 %v709, %v776
        %778 = vmatprep.mubr.bf16.mxu0 0
        %779 = vmatmul.mubr.bf16.gmra.mrb[0].mxu0 %v734
        %v780 = vpop.f32.mrb[0].mxu0
        %v781 = vadd.f32 %v713, %v780
        %v782 = vpop.f32.mrb[0].mxu0
        %v783 = vadd.f32 %v713, %v782
        %v784 = vpop.f32.mrb[0].mxu0
        %v785 = vadd.f32 %v717, %v784
        %v786 = vpop.f32.mrb[0].mxu0
        %v787 = vadd.f32 %v717, %v786
        %788 = vdwg.mxu0
        %789 = vmatprep.subr.bf16.mxu0 %v698
        %790 = vmatpush1.bf16.msra.mxu0 %v697
        %791 = vmatprep.subr.bf16.mxu0 %v702
        %792 = vmatpush1.bf16.msra.mxu0 %v701
        %793 = vmatprep.subr.bf16.mxu0 0
        %794 = vmatpush1.bf16.msra.mxu0 0
        %795 = vmatprep.subr.bf16.mxu0 0
        %796 = vmatpush1.bf16.msra.mxu0 0
        %797 = vmatprep.subr.bf16.mxu0 0
        %798 = vmatpush1.bf16.msra.mxu0 0
        %799 = vmatprep.subr.bf16.mxu0 0
        %800 = vmatpush1.bf16.msra.mxu0 0
        %801 = vmatprep.subr.bf16.mxu0 0
        %802 = vmatpush1.bf16.msra.mxu0 0
        %803 = vmatprep.subr.bf16.mxu0 0
        %804 = vmatpush1.bf16.msra.mxu0 0
        %805 = vmatprep.subr.bf16.mxu0 0
        %806 = vmatpush1.bf16.msra.mxu0 0
        %807 = vmatprep.subr.bf16.mxu0 0
        %808 = vmatpush1.bf16.msra.mxu0 0
        %809 = vmatprep.subr.bf16.mxu0 0
        %810 = vmatpush1.bf16.msra.mxu0 0
        %811 = vmatprep.subr.bf16.mxu0 0
        %812 = vmatpush1.bf16.msra.mxu0 0
        %813 = vmatprep.subr.bf16.mxu0 0
        %814 = vmatpush1.bf16.msra.mxu0 0
        %815 = vmatprep.subr.bf16.mxu0 0
        %816 = vmatpush1.bf16.msra.mxu0 0
        %817 = vmatprep.subr.bf16.mxu0 0
        %818 = vmatpush1.bf16.msra.mxu0 0
        %819 = vmatprep.subr.bf16.mxu0 0
        %820 = vmatpush1.bf16.msra.mxu0 0
        %821 = vmatprep.mubr.bf16.mxu0 0
        %822 = vmatmul.mubr.bf16.gmra.mrb[0].mxu0 %v731
        %v823 = vpop.f32.mrb[0].mxu0
        %v824 = vadd.f32 %v705, %v823
        %v825 = vpop.f32.mrb[0].mxu0
        %v826 = vadd.f32 %v705, %v825
        %v827 = vpop.f32.mrb[0].mxu0
        %v828 = vadd.f32 %v709, %v827
        %v829 = vpop.f32.mrb[0].mxu0
        %v830 = vadd.f32 %v709, %v829
        %831 = vmatprep.mubr.bf16.mxu0 0
        %832 = vmatmul.mubr.bf16.gmra.mrb[0].mxu0 %v734
        %v833 = vpop.f32.mrb[0].mxu0
        %v834 = vadd.f32 %v713, %v833
        %v835 = vpop.f32.mrb[0].mxu0
        %v836 = vadd.f32 %v713, %v835
        %v837 = vpop.f32.mrb[0].mxu0
        %v838 = vadd.f32 %v717, %v837
        %v839 = vpop.f32.mrb[0].mxu0
        %v840 = vadd.f32 %v717, %v839
        %841 = vdwg.mxu0
        %v842 = vmax.f32 %v771, 0.0
        %v843 = vmax.f32 %v773, 0.0
        %v844 = vmax.f32 %v824, 0.0
        %v845 = vmax.f32 %v826, 0.0
        %v846 = vmax.f32 %v775, 0.0
        %v847 = vmax.f32 %v777, 0.0
        %v848 = vmax.f32 %v828, 0.0
        %v849 = vmax.f32 %v830, 0.0
        %v850 = vmax.f32 %v781, 0.0
        %v851 = vmax.f32 %v783, 0.0
        %v852 = vmax.f32 %v834, 0.0
        %v853 = vmax.f32 %v836, 0.0
        %v854 = vmax.f32 %v785, 0.0
        %v855 = vmax.f32 %v787, 0.0
        %v856 = vmax.f32 %v838, 0.0
        %v857 = vmax.f32 %v840, 0.0
        %s858 = scalar_lea.vmem %s2, 16
        %v859 = vld [vmem:[%s858] sm:$0xf]
        %v860 = vld [vmem:[%s858 + $0x4] sm:$0xf]
        %v861 = vld [vmem:[%s858 + $0x8] sm:$0xf]
        %v862 = vld [vmem:[%s858 + $0xc] sm:$0xf]
        %v863 = vpack.c.bf16 %v846, %v842
        %v864 = vpack.c.bf16 %v847, %v843
        %v865 = vpack.c.bf16 %v848, %v844
        %v866 = vpack.c.bf16 %v849, %v845
        %v867 = vpack.c.bf16 %v854, %v850
        %v868 = vpack.c.bf16 %v855, %v851
        %v869 = vpack.c.bf16 %v856, %v852
        %v870 = vpack.c.bf16 %v857, %v853
        %871 = vset.pattern.permute.xlu0 2
        %872 = vperm.xlu0 %871, %v268
        %v873 = vpop.permute.xlu0 %872
        %875 = vset.pattern.permute.xlu0 2
        %876 = vperm.xlu0 %875, %v269
        %v877 = vpop.permute.xlu0 %876
        %879 = vset.pattern.permute.xlu0 2
        %880 = vperm.xlu0 %879, %v270
        %v881 = vpop.permute.xlu0 %880
        %883 = vset.pattern.permute.xlu0 2
        %884 = vperm.xlu0 %883, %v271
        %v885 = vpop.permute.xlu0 %884
        %v891 = vunpack.c.l.b16 %v859
        %v892 = vunpack.c.l.b16 %v860
        %v893 = vunpack.c.l.b16 %v861
        %v894 = vunpack.c.l.b16 %v862
        %v895 = vpack.c.b16 %v892, %v891
        %v896 = vpack.c.b16 %v894, %v893
        %v898 = vsel %vm729, %v895, 0
        %v901 = vsel %vm729, %v896, 0
        %903 = vmatprep.subr.bf16.mxu0 %v864
        %904 = vmatpush1.bf16.msra.mxu0 %v863
        %905 = vmatprep.subr.bf16.mxu0 %v868
        %906 = vmatpush1.bf16.msra.mxu0 %v867
        %907 = vmatprep.subr.bf16.mxu0 0
        %908 = vmatpush1.bf16.msra.mxu0 0
        %909 = vmatprep.subr.bf16.mxu0 0
        %910 = vmatpush1.bf16.msra.mxu0 0
        %911 = vmatprep.subr.bf16.mxu0 0
        %912 = vmatpush1.bf16.msra.mxu0 0
        %913 = vmatprep.subr.bf16.mxu0 0
        %914 = vmatpush1.bf16.msra.mxu0 0
        %915 = vmatprep.subr.bf16.mxu0 0
        %916 = vmatpush1.bf16.msra.mxu0 0
        %917 = vmatprep.subr.bf16.mxu0 0
        %918 = vmatpush1.bf16.msra.mxu0 0
        %919 = vmatprep.subr.bf16.mxu0 0
        %920 = vmatpush1.bf16.msra.mxu0 0
        %921 = vmatprep.subr.bf16.mxu0 0
        %922 = vmatpush1.bf16.msra.mxu0 0
        %923 = vmatprep.subr.bf16.mxu0 0
        %924 = vmatpush1.bf16.msra.mxu0 0
        %925 = vmatprep.subr.bf16.mxu0 0
        %926 = vmatpush1.bf16.msra.mxu0 0
        %927 = vmatprep.subr.bf16.mxu0 0
        %928 = vmatpush1.bf16.msra.mxu0 0
        %929 = vmatprep.subr.bf16.mxu0 0
        %930 = vmatpush1.bf16.msra.mxu0 0
        %931 = vmatprep.subr.bf16.mxu0 0
        %932 = vmatpush1.bf16.msra.mxu0 0
        %933 = vmatprep.subr.bf16.mxu0 0
        %934 = vmatpush1.bf16.msra.mxu0 0
        %935 = vmatprep.mubr.bf16.mxu0 0
        %936 = vmatmul.mubr.bf16.gmra.mrb[0].mxu0 %v898
        %v937 = vpop.f32.mrb[0].mxu0
        %v938 = vadd.f32 %v873, %v937
        %v939 = vpop.f32.mrb[0].mxu0
        %v940 = vadd.f32 %v873, %v939
        %v941 = vpop.f32.mrb[0].mxu0
        %v942 = vadd.f32 %v877, %v941
        %v943 = vpop.f32.mrb[0].mxu0
        %v944 = vadd.f32 %v877, %v943
        %945 = vmatprep.mubr.bf16.mxu0 0
        %946 = vmatmul.mubr.bf16.gmra.mrb[0].mxu0 %v901
        %v947 = vpop.f32.mrb[0].mxu0
        %v948 = vadd.f32 %v881, %v947
        %v949 = vpop.f32.mrb[0].mxu0
        %v950 = vadd.f32 %v881, %v949
        %v951 = vpop.f32.mrb[0].mxu0
        %v952 = vadd.f32 %v885, %v951
        %v953 = vpop.f32.mrb[0].mxu0
        %v954 = vadd.f32 %v885, %v953
        %955 = vdwg.mxu0
        %956 = vmatprep.subr.bf16.mxu0 %v866
        %957 = vmatpush1.bf16.msra.mxu0 %v865
        %958 = vmatprep.subr.bf16.mxu0 %v870
        %959 = vmatpush1.bf16.msra.mxu0 %v869
        %960 = vmatprep.subr.bf16.mxu0 0
        %961 = vmatpush1.bf16.msra.mxu0 0
        %962 = vmatprep.subr.bf16.mxu0 0
        %963 = vmatpush1.bf16.msra.mxu0 0
        %964 = vmatprep.subr.bf16.mxu0 0
        %965 = vmatpush1.bf16.msra.mxu0 0
        %966 = vmatprep.subr.bf16.mxu0 0
        %967 = vmatpush1.bf16.msra.mxu0 0
        %968 = vmatprep.subr.bf16.mxu0 0
        %969 = vmatpush1.bf16.msra.mxu0 0
        %970 = vmatprep.subr.bf16.mxu0 0
        %971 = vmatpush1.bf16.msra.mxu0 0
        %972 = vmatprep.subr.bf16.mxu0 0
        %973 = vmatpush1.bf16.msra.mxu0 0
        %974 = vmatprep.subr.bf16.mxu0 0
        %975 = vmatpush1.bf16.msra.mxu0 0
        %976 = vmatprep.subr.bf16.mxu0 0
        %977 = vmatpush1.bf16.msra.mxu0 0
        %978 = vmatprep.subr.bf16.mxu0 0
        %979 = vmatpush1.bf16.msra.mxu0 0
        %980 = vmatprep.subr.bf16.mxu0 0
        %981 = vmatpush1.bf16.msra.mxu0 0
        %982 = vmatprep.subr.bf16.mxu0 0
        %983 = vmatpush1.bf16.msra.mxu0 0
        %984 = vmatprep.subr.bf16.mxu0 0
        %985 = vmatpush1.bf16.msra.mxu0 0
        %986 = vmatprep.subr.bf16.mxu0 0
        %987 = vmatpush1.bf16.msra.mxu0 0
        %988 = vmatprep.mubr.bf16.mxu0 0
        %989 = vmatmul.mubr.bf16.gmra.mrb[0].mxu0 %v898
        %v990 = vpop.f32.mrb[0].mxu0
        %v991 = vadd.f32 %v873, %v990
        %v992 = vpop.f32.mrb[0].mxu0
        %v993 = vadd.f32 %v873, %v992
        %v994 = vpop.f32.mrb[0].mxu0
        %v995 = vadd.f32 %v877, %v994
        %v996 = vpop.f32.mrb[0].mxu0
        %v997 = vadd.f32 %v877, %v996
        %998 = vmatprep.mubr.bf16.mxu0 0
        %999 = vmatmul.mubr.bf16.gmra.mrb[0].mxu0 %v901
        %v1000 = vpop.f32.mrb[0].mxu0
        %v1001 = vadd.f32 %v881, %v1000
        %v1002 = vpop.f32.mrb[0].mxu0
        %v1003 = vadd.f32 %v881, %v1002
        %v1004 = vpop.f32.mrb[0].mxu0
        %v1005 = vadd.f32 %v885, %v1004
        %v1006 = vpop.f32.mrb[0].mxu0
        %v1007 = vadd.f32 %v885, %v1006
        %1008 = vdwg.mxu0
        %v1009 = vmax.f32 %v938, 0.0
        %v1010 = vmax.f32 %v940, 0.0
        %v1011 = vmax.f32 %v991, 0.0
        %v1012 = vmax.f32 %v993, 0.0
        %v1013 = vmax.f32 %v942, 0.0
        %v1014 = vmax.f32 %v944, 0.0
        %v1015 = vmax.f32 %v995, 0.0
        %v1016 = vmax.f32 %v997, 0.0
        %v1017 = vmax.f32 %v948, 0.0
        %v1018 = vmax.f32 %v950, 0.0
        %v1019 = vmax.f32 %v1001, 0.0
        %v1020 = vmax.f32 %v1003, 0.0
        %v1021 = vmax.f32 %v952, 0.0
        %v1022 = vmax.f32 %v954, 0.0
        %v1023 = vmax.f32 %v1005, 0.0
        %v1024 = vmax.f32 %v1007, 0.0
        %v1025 = vld [vmem:[%s3] sm:$0x1]
        %1026 = vset.pattern.permute.xlu0 3
        %1027 = vperm.xlu0 %1026, %v268
        %v1028 = vpop.permute.xlu0 %1027
        %1030 = vset.pattern.permute.xlu0 3
        %1031 = vperm.xlu0 %1030, %v269
        %v1032 = vpop.permute.xlu0 %1031
        %1034 = vset.pattern.permute.xlu0 3
        %1035 = vperm.xlu0 %1034, %v270
        %v1036 = vpop.permute.xlu0 %1035
        %1038 = vset.pattern.permute.xlu0 3
        %1039 = vperm.xlu0 %1038, %v271
        %v1040 = vpop.permute.xlu0 %1039
        %v1042 = vmul.f32 %v1009, %v1028
        %v1043 = vmul.f32 %v1010, %v1028
        %v1044 = vmul.f32 %v1011, %v1028
        %v1045 = vmul.f32 %v1012, %v1028
        %v1046 = vmul.f32 %v1013, %v1032
        %v1047 = vmul.f32 %v1014, %v1032
        %v1048 = vmul.f32 %v1015, %v1032
        %v1049 = vmul.f32 %v1016, %v1032
        %v1050 = vmul.f32 %v1017, %v1036
        %v1051 = vmul.f32 %v1018, %v1036
        %v1052 = vmul.f32 %v1019, %v1036
        %v1053 = vmul.f32 %v1020, %v1036
        %v1054 = vmul.f32 %v1021, %v1040
        %v1055 = vmul.f32 %v1022, %v1040
        %v1056 = vmul.f32 %v1023, %v1040
        %v1057 = vmul.f32 %v1024, %v1040
        %v1058 = vadd.f32 %v1042, %v1046
        %v1059 = vadd.f32 %v1058, %v1050
        %v1060 = vadd.f32 %v1059, %v1054
        %v1061 = vrot.slane %v1060, 4
        %v1062 = vadd.f32 %v1060, %v1061
        %v1063 = vrot.slane %v1062, 2
        %v1064 = vadd.f32 %v1062, %v1063
        %v1065 = vrot.slane %v1064, 1
        %v1066 = vadd.f32 %v1064, %v1065
        %v1067 = vadd.f32 %v1043, %v1047
        %v1068 = vadd.f32 %v1067, %v1051
        %v1069 = vadd.f32 %v1068, %v1055
        %v1070 = vrot.slane %v1069, 4
        %v1071 = vadd.f32 %v1069, %v1070
        %v1072 = vrot.slane %v1071, 2
        %v1073 = vadd.f32 %v1071, %v1072
        %v1074 = vrot.slane %v1073, 1
        %v1075 = vadd.f32 %v1073, %v1074
        %v1076 = vadd.f32 %v1044, %v1048
        %v1077 = vadd.f32 %v1076, %v1052
        %v1078 = vadd.f32 %v1077, %v1056
        %v1079 = vrot.slane %v1078, 4
        %v1080 = vadd.f32 %v1078, %v1079
        %v1081 = vrot.slane %v1080, 2
        %v1082 = vadd.f32 %v1080, %v1081
        %v1083 = vrot.slane %v1082, 1
        %v1084 = vadd.f32 %v1082, %v1083
        %v1085 = vadd.f32 %v1045, %v1049
        %v1086 = vadd.f32 %v1085, %v1053
        %v1087 = vadd.f32 %v1086, %v1057
        %v1088 = vrot.slane %v1087, 4
        %v1089 = vadd.f32 %v1087, %v1088
        %v1090 = vrot.slane %v1089, 2
        %v1091 = vadd.f32 %v1089, %v1090
        %v1092 = vrot.slane %v1091, 1
        %v1093 = vadd.f32 %v1091, %v1092
        %1095 = vset.pattern.permute.xlu0 4
        %1096 = vperm.xlu0 %1095, %v1025
        %v1097 = vpop.permute.xlu0 %1096
        %v1099 = vadd.f32 %v1066, %v1097
        %v1100 = vadd.f32 %v1075, %v1097
        %v1101 = vadd.f32 %v1084, %v1097
        %v1102 = vadd.f32 %v1093, %v1097
        %v1107 = vcombine.low %v1099, %v1100
        %v1108 = vcombine.low %v1101, %v1102
        %v1110 = vunpack.c.l.s4 1966171168
        %v1111 = vunpack.c.0.s8 %v1110
        %v1112 = vlaneseq
        %v1113 = vshrl.u32 %v1112, 7
        %v1114 = vsub.s32 %v1111, %v1113
        %v1115 = vrot.slane %v1107, %v1114
        %v1117 = vunpack.c.l.s4 1966171168
        %v1118 = vunpack.c.0.s8 %v1117
        %v1119 = vlaneseq
        %v1120 = vshrl.u32 %v1119, 7
        %v1121 = vsub.s32 %v1118, %v1120
        %v1122 = vrot.slane %v1108, %v1121
        %v1123 = vcombine.low %v1115, %v1122
        %v1125 = vunpack.c.l.s4 1966171168
        %v1126 = vunpack.c.0.s8 %v1125
        %v1127 = vlaneseq
        %v1128 = vshrl.u32 %v1127, 7
        %v1129 = vsub.s32 %v1126, %v1128
        %v1130 = vrot.slane %v1123, %v1129
        %v1132 = vlaneseq
        %vm1133 = vcmp.ge.s32.totalorder %v1132, 0
        %vm1134 = vcmp.lt.s32.totalorder %v1132, 512
        %vm1135 = vmand %vm1133, %vm1134
        %1136 = vst.msk [vmem:[%s191] sm:$0xf] %vm1135, %v1130
        %s1137 = sand.u32 %s115, 1
        %s1138 = scalar_lea.sflag [#allocation3], %s1137
        %s1139 = sand.u32 %s115, 1
        %s1140 = smul.addr %s1139, 4
        %s1141 = scalar_lea.vmem [#allocation2], %s1140
        // Predicated region
        $region37: #{_msd_sdf_forward_impl.1} parent=35 // pred_check
          %p1142 = pneg %p125
        $region38: #{_msd_sdf_forward_impl.1} parent=35 // pred_check_branch
          %1144 = sbr.rel (%p1142) target = $region40
        $region39: #{_msd_sdf_forward_impl.1} parent=35 // pred_region
          %s1145 = smul.u32 4, %s18
          %s1147 = ssub.s32 64, 64
          %1148 = vsyncadd %s1138, %s1147
          %s1149 = smul.addr %s1145, 16
          %s1150 = scalar_lea.hbm %s4, %s1149
          %s1152 = sshll.u32 %s1141, 4
          %s1153 = int_to_ptr.vmem [resolvable:$true] %s1152
          %1155 = dma.vmem_to_hbm [thread:$0]  %s1153, 64, %s1150, %s1138
        $region40: #{_msd_sdf_forward_impl.1} parent=35 // pred_fallthru
          _
      $region36: #{_msd_sdf_forward_impl.1} parent=5 // pred_fallthru
        _
      %p1156 = scmp.le.s32.totalorder 2, %s13
      // Predicated region
      $region41: #{_msd_sdf_forward_impl.1} parent=5 // pred_check
        %p1157 = pneg %p1156
      $region42: #{_msd_sdf_forward_impl.1} parent=5 // pred_check_branch
        %1159 = sbr.rel (%p1157) target = $region44
      $region43: #{_msd_sdf_forward_impl.1} parent=5 // pred_region
        %s1160 = ssub.s32 %s13, 2
        // Predicated region
        $region45: #{_msd_sdf_forward_impl.1} parent=43 // pred_check
          %p1161 = pneg %p131
        $region46: #{_msd_sdf_forward_impl.1} parent=43 // pred_check_branch
          %1163 = sbr.rel (%p1161) target = $region48
        $region47: #{_msd_sdf_forward_impl.1} parent=43 // pred_region
          %s1164 = sand.u32 %s116, 1
          %s1165 = scalar_lea.sflag [#allocation3], %s1164
          %s1166 = sand.u32 %s116, 1
          %s1167 = smul.addr %s1166, 4
          %s1168 = scalar_lea.vmem [#allocation2], %s1167
          %1169 = dma.done %s1165, 64
        $region48: #{_msd_sdf_forward_impl.1} parent=43 // pred_fallthru
          _
      $region44: #{_msd_sdf_forward_impl.1} parent=5 // pred_fallthru
        _
    $region6: #{_msd_sdf_forward_impl.1} parent=1 // loop_footer
      %s17 = sadd.s32 1, %s13
    $region7: #{_msd_sdf_forward_impl.1} parent=1 // loop_footer_branch
      %12 = sbr.rel target = $region3
    $region8: #{_msd_sdf_forward_impl.1} parent=1 // loop_exit
      _
    %1170 = vsyncpa [#allocation3], 1
    %s1171 = scalar_lea.sflag [#allocation3], 1
    %1172 = vsyncpa %s1171, 1

</llo_original>
